<compile_context>
chip_gen: v7x
topology: tpu7x:2x2x1
jax: 0.10.0
libtpu: 0.0.40
codegen_flags: <defaults>
</compile_context>

<pallas_src>
import functools

import jax
import jax.numpy as jnp
import numpy as np
from jax.experimental import pallas as pl
from jax.experimental.pallas import tpu as pltpu


def _round_up(n, m):
    return ((n + m - 1) // m) * m


def _sublane(dtype):
    # Native sublane tile height per dtype: f32 -> 8, bf16 -> 16, int8/fp8 -> 32.
    return {4: 8, 2: 16, 1: 32}[np.dtype(dtype).itemsize]


def _default_batch_blocks(B, out_dtype, mxu_dtype):
    # Time is inherently serial, so only batch can occupy a 2nd TensorCore.
    # v7x has 2 TCs/chip -> split the batch into two "parallel" grid blocks there;
    # on single-TC chips (v5e/v6e) splitting only adds grid overhead.
    try:
        kind = jax.devices()[0].device_kind.lower()
    except Exception:
        return 1
    if "v7" not in kind:
        return 1
    sub = max(_sublane(out_dtype), _sublane(mxu_dtype))
    return 2 if B >= 2 * sub else 1


def _lstm_seq_kernel(xproj_ref, bias_ref, h0_ref, c0_ref, whh_hbm,
                     out_ref, hn_ref, cn_ref,
                     whh_sc, h_sc, c_sc,
                     *, t_chunk, t_total):
    """One grid step == one (batch-block, time-chunk) tile; t_chunk unrolled timesteps.

    xproj_ref : (t_chunk, b_blk, 4*Hp) mxu dtype   precomputed x @ W_ih^T (no bias)
    bias_ref  : (1, 4*Hp) f32                      b_ih + b_hh (re-added in f32 here)
    h0/c0_ref : (b_blk, Hp) f32                    initial states for this batch block
    whh_hbm   : (Hp, 4*Hp) HBM ref                 recurrent weight, pre-transposed
    out_ref   : (t_chunk, b_blk, Hp)               hidden outputs for this chunk
    hn/cn_ref : (b_blk, Hp)                        final states (last chunk only)
    whh_sc    : (Hp, 4*Hp) VMEM scratch            single-buffered resident weights
    h_sc/c_sc : (b_blk, Hp) f32 VMEM scratch       recurrence carries
    """
    chunk = pl.program_id(1)
    b_blk, Hp = h_sc.shape

    @pl.when(chunk == 0)
    def _():
        # Recurrent weights: DMA'd once per batch block into a single-buffered VMEM
        # scratch (grid-constant, so no double-buffered BlockSpec slab).  Re-copying
        # per batch block keeps it correct under megacore batch sharding.
        pltpu.sync_copy(whh_hbm, whh_sc)
        h_sc[...] = h0_ref[...]
        c_sc[...] = c0_ref[...]

    whh = whh_sc[...]                                          # (Hp, 4Hp) mxu dtype
    bias = jnp.broadcast_to(bias_ref[...], (b_blk, 4 * Hp))    # hoisted f32 broadcast
    h = h_sc[...]                                              # f32 carries
    c = c_sc[...]

    needs_mask = (t_total % t_chunk) != 0                      # static

    # Fully unrolled inner time loop (straight-line code for the LLO scheduler).
    for t in range(t_chunk):
        # Only the recurrent matmul is on the serial critical path; bf16 operands,
        # f32 accumulation.  Bias is added in f32 (precision recovered from bf16 x_proj).
        gates = (xproj_ref[t].astype(jnp.float32) + bias
                 + jnp.dot(h.astype(whh.dtype), whh,
                           preferred_element_type=jnp.float32))

        # PyTorch gate order: input, forget, cell(g), output.
        # sigmoid(z) = 0.5*(tanh(0.5*z)+1): one EUP op per gate instead of exp+div.
        i_g = 0.5 * jnp.tanh(0.5 * gates[:, 0 * Hp:1 * Hp]) + 0.5
        f_g = 0.5 * jnp.tanh(0.5 * gates[:, 1 * Hp:2 * Hp]) + 0.5
        g_g = jnp.tanh(gates[:, 2 * Hp:3 * Hp])
        o_g = 0.5 * jnp.tanh(0.5 * gates[:, 3 * Hp:4 * Hp]) + 0.5

        c_new = f_g * c + i_g * g_g
        h_new = o_g * jnp.tanh(c_new)

        out_ref[t] = h_new.astype(out_ref.dtype)               # dense (sublane,128) store

        if needs_mask:                                          # only when T was padded
            valid = (chunk * t_chunk + t) < t_total
            h = jnp.where(valid, h_new, h)
            c = jnp.where(valid, c_new, c)
        else:
            h, c = h_new, c_new

    h_sc[...] = h
    c_sc[...] = c

    # Final states: written only once, on the last chunk of this batch block.
    @pl.when(chunk == pl.num_programs(1) - 1)
    def _():
        hn_ref[...] = h.astype(hn_ref.dtype)
        cn_ref[...] = c.astype(cn_ref.dtype)


@functools.partial(jax.jit, static_argnames=("t_chunk", "batch_blocks", "mxu_dtype"))
def _lstm_forward_impl(x, h0, c0, w_ih, w_hh, b_ih, b_hh, *,
                       t_chunk, batch_blocks, mxu_dtype):
    T, B, In = x.shape
    H = w_hh.shape[1]
    out_dtype = x.dtype
    mxu_b = np.dtype(mxu_dtype).itemsize
    out_b = np.dtype(out_dtype).itemsize

    Hp = _round_up(H, 128)                                   # lane-aligned hidden size
    sub = max(_sublane(out_dtype), _sublane(mxu_dtype))      # dtype-aware sublane pad
    Bp = _round_up(B, sub * batch_blocks)
    b_blk = Bp // batch_blocks
    T_pad = _round_up(T, t_chunk)
    n_chunks = T_pad // t_chunk

    # ---- Gate-blocked, lane-padded weights (padded lanes stay exactly zero). ----
    wih_t = w_ih.astype(jnp.float32).T.reshape(In, 4, H)
    wih_t_p = jnp.zeros((In, 4, Hp), mxu_dtype).at[:, :, :H].set(
        wih_t.astype(mxu_dtype)).reshape(In, 4 * Hp)

    whh_t = w_hh.astype(jnp.float32).T.reshape(H, 4, H)
    whh_t_p = jnp.zeros((Hp, 4, Hp), mxu_dtype).at[:H, :, :H].set(
        whh_t.astype(mxu_dtype)).reshape(Hp, 4 * Hp)

    bias_p = jnp.zeros((4, Hp), jnp.float32).at[:, :H].set(
        (b_ih + b_hh).astype(jnp.float32).reshape(4, H)).reshape(1, 4 * Hp)

    # ---- Hoisted, time-parallel input projection: one big MXU matmul. ----
    # Default: bf16 operands + f32 accumulation (918/996 TF/s path on v6e/v7x);
    # HIGHEST precision only on the opt-in full-f32 accuracy path.
    proj_precision = (jax.lax.Precision.HIGHEST
                      if np.dtype(mxu_dtype) == np.dtype(np.float32) else None)
    x_p = jnp.zeros((T_pad, Bp, In), mxu_dtype).at[:T, :B, :].set(x.astype(mxu_dtype))
    x_proj = jnp.dot(x_p.reshape(T_pad * Bp, In), wih_t_p,
                     preferred_element_type=jnp.float32,
                     precision=proj_precision)
    # Stream x_proj in the MXU dtype (halves HBM traffic + chunk VMEM for bf16).
    x_proj = x_proj.astype(mxu_dtype).reshape(T_pad, Bp, 4 * Hp)

    # Initial states in f32 (no precision loss for bf16 inputs).
    h0_p = jnp.zeros((Bp, Hp), jnp.float32).at[:B, :H].set(h0[0].astype(jnp.float32))
    c0_p = jnp.zeros((Bp, Hp), jnp.float32).at[:B, :H].set(c0[0].astype(jnp.float32))

    kernel = functools.partial(_lstm_seq_kernel, t_chunk=t_chunk, t_total=T)

    grid_spec = pltpu.PrefetchScalarGridSpec(
        num_scalar_prefetch=0,
        grid=(batch_blocks, n_chunks),     # batch blocks parallel, time serial (last)
        in_specs=[
            pl.BlockSpec((t_chunk, b_blk, 4 * Hp), lambda b, c: (c, b, 0)),  # x_proj
            pl.BlockSpec((1, 4 * Hp), lambda b, c: (0, 0)),                  # bias (f32)
            pl.BlockSpec((b_blk, Hp), lambda b, c: (b, 0)),                  # h0 block
            pl.BlockSpec((b_blk, Hp), lambda b, c: (b, 0)),                  # c0 block
            pl.BlockSpec(memory_space=pl.ANY),                               # W_hh^T (HBM)
        ],
        out_specs=[
            pl.BlockSpec((t_chunk, b_blk, Hp), lambda b, c: (c, b, 0)),      # output
            pl.BlockSpec((b_blk, Hp), lambda b, c: (b, 0)),                  # h_n
            pl.BlockSpec((b_blk, Hp), lambda b, c: (b, 0)),                  # c_n
        ],
        scratch_shapes=[
            pltpu.VMEM((Hp, 4 * Hp), mxu_dtype),   # resident recurrent weights (1 copy)
            pltpu.VMEM((b_blk, Hp), jnp.float32),  # h carry
            pltpu.VMEM((b_blk, Hp), jnp.float32),  # c carry
        ],
    )

    # Explicit VMEM budget: real working set + 50% + 4 MiB headroom, floored at the
    # always-safe 16 MiB and capped below v7x's 64 MiB physical VMEM per TC.
    working = (Hp * 4 * Hp * mxu_b                      # W_hh^T scratch (single copy)
               + 2 * t_chunk * b_blk * 4 * Hp * mxu_b   # double-buffered x_proj chunk
               + 2 * t_chunk * b_blk * Hp * out_b       # double-buffered out chunk
               + 2 * b_blk * Hp * 4                     # f32 h/c carries
               + 4 * b_blk * Hp * out_b                 # h_n / c_n resident buffers
               + 4 * b_blk * Hp * 4                     # h0 / c0 buffers
               + 2 * 4 * Hp * 4)                        # bias buffers
    vmem_limit = min(max(int(1.5 * working) + (4 << 20), 16 << 20), 60 << 20)

    out_p, hn_p, cn_p = pl.pallas_call(
        kernel,
        out_shape=(
            jax.ShapeDtypeStruct((T_pad, Bp, Hp), out_dtype),
            jax.ShapeDtypeStruct((Bp, Hp), out_dtype),
            jax.ShapeDtypeStruct((Bp, Hp), out_dtype),
        ),
        grid_spec=grid_spec,
        compiler_params=pltpu.CompilerParams(
            dimension_semantics=("parallel", "arbitrary"),
            vmem_limit_bytes=vmem_limit),
    )(x_proj, bias_p, h0_p, c0_p, whh_t_p)

    out = out_p[:T, :B, :H]
    return out, (hn_p[:B, :H][None], cn_p[:B, :H][None])


def lstm_cell_forward(x, h0, c0, w_ih, w_hh, b_ih, b_hh, *,
                      t_chunk=None, batch_blocks=None, mxu_dtype=jnp.bfloat16):
    """Pallas LSTM forward matching nn.LSTM semantics.

    x: (T, B, In)   h0, c0: (1, B, H)
    w_ih: (4H, In)  w_hh: (4H, H)   b_ih, b_hh: (4H,)
    Returns (output, (h_n, c_n)): output (T, B, H), h_n/c_n (1, B, H).

    mxu_dtype=jnp.bfloat16 (default): mixed precision — MXU operands bf16, all gate
    math and the h/c carries f32.  Pass mxu_dtype=jnp.float32 for a full-f32 path.
    """
    T, B, _ = x.shape
    H = w_hh.shape[1]
    if T == 0:  # zero-length sequence: hidden passes through unchanged
        return jnp.zeros((0, B, H), x.dtype), (h0, c0)

    mxu_dtype = np.dtype(mxu_dtype)
    if t_chunk is None:
        # Prefer a chunk that divides T (mask statically elided); larger chunks
        # amortize the ~0.35us per-grid-step overhead.
        if T <= 32:
            t_chunk = T
        else:
            t_chunk = next((c for c in (32, 24, 16, 8) if T % c == 0), 16)
    if batch_blocks is None:
        batch_blocks = _default_batch_blocks(B, x.dtype, mxu_dtype)

    return _lstm_forward_impl(x, h0, c0, w_ih, w_hh, b_ih, b_hh,
                              t_chunk=int(t_chunk),
                              batch_blocks=int(batch_blocks),
                              mxu_dtype=mxu_dtype)


def _reference_lstm(x, h0, c0, w_ih, w_hh, b_ih, b_hh):
    """Pure-JAX reference (lax.scan, full f32) for correctness checks."""
    H = w_hh.shape[1]
    hi = jax.lax.Precision.HIGHEST

    def step(carry, x_t):
        h, c = carry
        gates = (jnp.dot(x_t, w_ih.T, precision=hi)
                 + jnp.dot(h, w_hh.T, precision=hi) + b_ih + b_hh)
        i = jax.nn.sigmoid(gates[:, 0 * H:1 * H])
        f = jax.nn.sigmoid(gates[:, 1 * H:2 * H])
        g = jnp.tanh(gates[:, 2 * H:3 * H])
        o = jax.nn.sigmoid(gates[:, 3 * H:4 * H])
        c = f * c + i * g
        h = o * jnp.tanh(c)
        return (h, c), h

    (h_n, c_n), ys = jax.lax.scan(step, (h0[0], c0[0]), x)
    return ys, (h_n[None], c_n[None])


if __name__ == "__main__":
    # Cell('lstm', input_size=32, output_size=32, nlayers=1, bidir=False)
    T, B, In, H = 8, 4, 32, 32
    key = jax.random.PRNGKey(0)
    k_x, k_wih, k_whh, k_bih, k_bhh, k_h, k_c, k_x2 = jax.random.split(key, 8)

    scale = 1.0 / jnp.sqrt(H)   # PyTorch-style uniform(-1/sqrt(H), 1/sqrt(H))
    x = jax.random.normal(k_x, (T, B, In), jnp.float32)
    w_ih = jax.random.uniform(k_wih, (4 * H, In), jnp.float32, -scale, scale)
    w_hh = jax.random.uniform(k_whh, (4 * H, H), jnp.float32, -scale, scale)
    b_ih = jax.random.uniform(k_bih, (4 * H,), jnp.float32, -scale, scale)
    b_hh = jax.random.uniform(k_bhh, (4 * H,), jnp.float32, -scale, scale)

    # Cell.hidden_state(bs=B): zero-initialized (1, B, H) tensors for LSTM.
    h0 = jnp.zeros((1, B, H), jnp.float32)
    c0 = jnp.zeros((1, B, H), jnp.float32)

    ref_out, (ref_h, ref_c) = _reference_lstm(x, h0, c0, w_ih, w_hh, b_ih, b_hh)

    # 1) Default path: bf16 MXU operands / f32 math+carries vs. full-f32 reference.
    #    Tolerance is the bf16 mixed-precision envelope (observed error ~1e-3).
    TOL = dict(atol=3e-2, rtol=3e-2)
    out, (h_n, c_n) = lstm_cell_forward(x, h0, c0, w_ih, w_hh, b_ih, b_hh)
    jax.block_until_ready((out, h_n, c_n))
    assert out.shape == (T, B, H) and h_n.shape == (1, B, H) and c_n.shape == (1, B, H)
    assert jnp.allclose(out, ref_out, **TOL)
    assert jnp.allclose(h_n, ref_h, **TOL)
    assert jnp.allclose(c_n, ref_c, **TOL)

    # 2) Opt-in full-f32 MXU path: tight tolerance vs. the HIGHEST-precision reference.
    out32, (h32, c32) = lstm_cell_forward(x, h0, c0, w_ih, w_hh, b_ih, b_hh,
                                          mxu_dtype=jnp.float32)
    jax.block_until_ready(out32)
    assert jnp.allclose(out32, ref_out, atol=1e-3, rtol=1e-3)
    assert jnp.allclose(h32, ref_h, atol=1e-3, rtol=1e-3)
    assert jnp.allclose(c32, ref_c, atol=1e-3, rtol=1e-3)

    # 3) Long sequence (error accumulation check; auto t_chunk=32 divides 96, no mask).
    T3 = 96
    x3 = jax.random.normal(k_x2, (T3, B, In), jnp.float32)
    out3, (h3, c3) = lstm_cell_forward(x3, h0, c0, w_ih, w_hh, b_ih, b_hh)
    jax.block_until_ready(out3)
    r3, (rh3, rc3) = _reference_lstm(x3, h0, c0, w_ih, w_hh, b_ih, b_hh)
    assert jnp.allclose(out3, r3, **TOL)
    assert jnp.allclose(h3, rh3, **TOL)
    assert jnp.allclose(c3, rc3, **TOL)

    # 4) Ragged T (exercises time masking), nonzero states, explicit small chunk and
    #    2 batch blocks (exercises the batch-parallel grid axis on every generation).
    T4, B4 = 37, 8
    x4 = jax.random.normal(k_x, (T4, B4, In), jnp.float32)
    h0_4 = 0.1 * jax.random.normal(k_h, (1, B4, H), jnp.float32)
    c0_4 = 0.1 * jax.random.normal(k_c, (1, B4, H), jnp.float32)
    out4, (h4, c4) = lstm_cell_forward(x4, h0_4, c0_4, w_ih, w_hh, b_ih, b_hh,
                                       t_chunk=8, batch_blocks=2)
    jax.block_until_ready(out4)
    r4, (rh4, rc4) = _reference_lstm(x4, h0_4, c0_4, w_ih, w_hh, b_ih, b_hh)
    assert jnp.allclose(out4, r4, **TOL)
    assert jnp.allclose(h4, rh4, **TOL)
    assert jnp.allclose(c4, rc4, **TOL)

    print("KERNEL_OK")
</pallas_src>

<mosaic_0001>
module attributes {stable_mosaic.version = 11 : i64} {
  func.func @_lstm_seq_kernel(%arg0: i32, %arg1: i32, %arg2: memref<8x16x512xbf16, #tpu.memory_space<vmem>>, %arg3: memref<1x512xf32, #tpu.memory_space<vmem>>, %arg4: memref<16x128xf32, #tpu.memory_space<vmem>>, %arg5: memref<16x128xf32, #tpu.memory_space<vmem>>, %arg6: memref<128x512xbf16, #tpu.memory_space<any>>, %arg7: memref<8x16x128xf32, #tpu.memory_space<vmem>>, %arg8: memref<16x128xf32, #tpu.memory_space<vmem>>, %arg9: memref<16x128xf32, #tpu.memory_space<vmem>>, %arg10: memref<128x512xbf16, #tpu.memory_space<vmem>>, %arg11: memref<16x128xf32, #tpu.memory_space<vmem>>, %arg12: memref<16x128xf32, #tpu.memory_space<vmem>>) attributes {dimension_semantics = [#tpu.dimension_semantics<parallel>, #tpu.dimension_semantics<arbitrary>], iteration_bounds = array<i64: 1, 1>, scalar_prefetch = 0 : i64, scratch_operands = 3 : i64, tpu.core_type = #tpu.core_type<tc>, window_params = [{transform_indices = @transform_0, window_bounds = array<i64: 8, 16, 512>}, {pipeline_mode = #tpu.pipeline_mode<synchronous>, transform_indices = @transform_1, window_bounds = array<i64: 1, 512>}, {transform_indices = @transform_2, window_bounds = array<i64: 16, 128>}, {transform_indices = @transform_3, window_bounds = array<i64: 16, 128>}, {}, {transform_indices = @transform_5, window_bounds = array<i64: 8, 16, 128>}, {transform_indices = @transform_6, window_bounds = array<i64: 16, 128>}, {transform_indices = @transform_7, window_bounds = array<i64: 16, 128>}]} {
    %c0_i32 = arith.constant 0 : i32
    %0 = arith.cmpi eq, %arg1, %c0_i32 : i32
    %1 = arith.extui %0 : i1 to i32
    %c0_i32_0 = arith.constant 0 : i32
    %2 = arith.cmpi ne, %1, %c0_i32_0 : i32
    scf.if %2 {
      "tpu.region"() ({
        %346 = tpu.sem_alloc : memref<!tpu.dma_semaphore, #tpu.memory_space<semaphore_mem>>
        tpu.enqueue_dma source(%arg6 : memref<128x512xbf16, #tpu.memory_space<any>>) target(%arg10 : memref<128x512xbf16, #tpu.memory_space<vmem>>) target_semaphore(%346 : memref<!tpu.dma_semaphore, #tpu.memory_space<semaphore_mem>>)
        tpu.wait_dma2 semaphore(%346 : memref<!tpu.dma_semaphore, #tpu.memory_space<semaphore_mem>>) src(%arg6 : memref<128x512xbf16, #tpu.memory_space<any>>) dst(%arg10 : memref<128x512xbf16, #tpu.memory_space<vmem>>)
        tpu.yield
      }) : () -> ()
      %c0_134 = arith.constant 0 : index
      %c0_135 = arith.constant 0 : index
      %342 = vector.load %arg4[%c0_134, %c0_135] : memref<16x128xf32, #tpu.memory_space<vmem>>, vector<16x128xf32>
      %c0_136 = arith.constant 0 : index
      %c0_137 = arith.constant 0 : index
      %343 = vector.load %arg11[%c0_136, %c0_137] : memref<16x128xf32, #tpu.memory_space<vmem>>, vector<16x128xf32>
      tpu.vector_store %arg11[%c0_136, %c0_137], %342 {strides = array<i32>} : memref<16x128xf32, #tpu.memory_space<vmem>>, vector<16x128xf32>,
      %c0_138 = arith.constant 0 : index
      %c0_139 = arith.constant 0 : index
      %344 = vector.load %arg5[%c0_138, %c0_139] : memref<16x128xf32, #tpu.memory_space<vmem>>, vector<16x128xf32>
      %c0_140 = arith.constant 0 : index
      %c0_141 = arith.constant 0 : index
      %345 = vector.load %arg12[%c0_140, %c0_141] : memref<16x128xf32, #tpu.memory_space<vmem>>, vector<16x128xf32>
      tpu.vector_store %arg12[%c0_140, %c0_141], %344 {strides = array<i32>} : memref<16x128xf32, #tpu.memory_space<vmem>>, vector<16x128xf32>,
    } else {
    }
    %c0 = arith.constant 0 : index
    %c0_1 = arith.constant 0 : index
    %3 = vector.load %arg10[%c0, %c0_1] : memref<128x512xbf16, #tpu.memory_space<vmem>>, vector<128x512xbf16>
    %c0_2 = arith.constant 0 : index
    %c0_3 = arith.constant 0 : index
    %4 = vector.load %arg3[%c0_2, %c0_3] : memref<1x512xf32, #tpu.memory_space<vmem>>, vector<1x512xf32>
    %5 = vector.shape_cast %4 : vector<1x512xf32> to vector<1x512xf32>
    %6 = vector.broadcast %5 : vector<1x512xf32> to vector<16x512xf32>
    %c0_4 = arith.constant 0 : index
    %c0_5 = arith.constant 0 : index
    %7 = vector.load %arg11[%c0_4, %c0_5] : memref<16x128xf32, #tpu.memory_space<vmem>>, vector<16x128xf32>
    %c0_6 = arith.constant 0 : index
    %c0_7 = arith.constant 0 : index
    %8 = vector.load %arg12[%c0_6, %c0_7] : memref<16x128xf32, #tpu.memory_space<vmem>>, vector<16x128xf32>
    %c0_8 = arith.constant 0 : index
    %c0_9 = arith.constant 0 : index
    %c0_10 = arith.constant 0 : index
    %9 = vector.load %arg2[%c0_8, %c0_9, %c0_10] : memref<8x16x512xbf16, #tpu.memory_space<vmem>>, vector<1x16x512xbf16>
    %10 = vector.shape_cast %9 : vector<1x16x512xbf16> to vector<16x512xbf16>
    %11 = arith.extf %10 : vector<16x512xbf16> to vector<16x512xf32>
    %12 = arith.addf %11, %6 : vector<16x512xf32>
    %13 = arith.truncf %7 : vector<16x128xf32> to vector<16x128xbf16>
    %cst = arith.constant dense<0.000000e+00> : vector<16x512xf32>
    %14 = tpu.matmul %13, %3, %cst {dimension_numbers = #tpu.dot_dimension_numbers<[1], [0], [0], [1], [0, 0, 1, 1], [], []>} : vector<16x128xbf16>, vector<128x512xbf16>, vector<16x512xf32> -> vector<16x512xf32>
    %15 = arith.addf %12, %14 : vector<16x512xf32>
    %16 = vector.extract_strided_slice %15 {offsets = [0, 0], sizes = [16, 128], strides = [1, 1]} : vector<16x512xf32> to vector<16x128xf32>
    %cst_11 = arith.constant 5.000000e-01 : f32
    %17 = vector.broadcast %cst_11 : f32 to vector<16x128xf32>
    %18 = arith.mulf %17, %16 : vector<16x128xf32>
    %19 = math.tanh %18 : vector<16x128xf32>
    %cst_12 = arith.constant 5.000000e-01 : f32
    %20 = vector.broadcast %cst_12 : f32 to vector<16x128xf32>
    %21 = arith.mulf %20, %19 : vector<16x128xf32>
    %cst_13 = arith.constant 5.000000e-01 : f32
    %22 = vector.broadcast %cst_13 : f32 to vector<16x128xf32>
    %23 = arith.addf %21, %22 : vector<16x128xf32>
    %24 = vector.extract_strided_slice %15 {offsets = [0, 128], sizes = [16, 128], strides = [1, 1]} : vector<16x512xf32> to vector<16x128xf32>
    %cst_14 = arith.constant 5.000000e-01 : f32
    %25 = vector.broadcast %cst_14 : f32 to vector<16x128xf32>
    %26 = arith.mulf %25, %24 : vector<16x128xf32>
    %27 = math.tanh %26 : vector<16x128xf32>
    %cst_15 = arith.constant 5.000000e-01 : f32
    %28 = vector.broadcast %cst_15 : f32 to vector<16x128xf32>
    %29 = arith.mulf %28, %27 : vector<16x128xf32>
    %cst_16 = arith.constant 5.000000e-01 : f32
    %30 = vector.broadcast %cst_16 : f32 to vector<16x128xf32>
    %31 = arith.addf %29, %30 : vector<16x128xf32>
    %32 = vector.extract_strided_slice %15 {offsets = [0, 256], sizes = [16, 128], strides = [1, 1]} : vector<16x512xf32> to vector<16x128xf32>
    %33 = math.tanh %32 : vector<16x128xf32>
    %34 = vector.extract_strided_slice %15 {offsets = [0, 384], sizes = [16, 128], strides = [1, 1]} : vector<16x512xf32> to vector<16x128xf32>
    %cst_17 = arith.constant 5.000000e-01 : f32
    %35 = vector.broadcast %cst_17 : f32 to vector<16x128xf32>
    %36 = arith.mulf %35, %34 : vector<16x128xf32>
    %37 = math.tanh %36 : vector<16x128xf32>
    %cst_18 = arith.constant 5.000000e-01 : f32
    %38 = vector.broadcast %cst_18 : f32 to vector<16x128xf32>
    %39 = arith.mulf %38, %37 : vector<16x128xf32>
    %cst_19 = arith.constant 5.000000e-01 : f32
    %40 = vector.broadcast %cst_19 : f32 to vector<16x128xf32>
    %41 = arith.addf %39, %40 : vector<16x128xf32>
    %42 = arith.mulf %31, %8 : vector<16x128xf32>
    %43 = arith.mulf %23, %33 : vector<16x128xf32>
    %44 = arith.addf %42, %43 : vector<16x128xf32>
    %45 = math.tanh %44 : vector<16x128xf32>
    %46 = arith.mulf %41, %45 : vector<16x128xf32>
    %c0_20 = arith.constant 0 : index
    %c0_21 = arith.constant 0 : index
    %c0_22 = arith.constant 0 : index
    %47 = vector.load %arg7[%c0_20, %c0_21, %c0_22] : memref<8x16x128xf32, #tpu.memory_space<vmem>>, vector<1x16x128xf32>
    %48 = vector.shape_cast %47 : vector<1x16x128xf32> to vector<16x128xf32>
    %49 = vector.shape_cast %46 : vector<16x128xf32> to vector<1x16x128xf32>
    tpu.vector_store %arg7[%c0_20, %c0_21, %c0_22], %49 {strides = array<i32>} : memref<8x16x128xf32, #tpu.memory_space<vmem>>, vector<1x16x128xf32>,
    %c1 = arith.constant 1 : index
    %c0_23 = arith.constant 0 : index
    %c0_24 = arith.constant 0 : index
    %50 = vector.load %arg2[%c1, %c0_23, %c0_24] : memref<8x16x512xbf16, #tpu.memory_space<vmem>>, vector<1x16x512xbf16>
    %51 = vector.shape_cast %50 : vector<1x16x512xbf16> to vector<16x512xbf16>
    %52 = arith.extf %51 : vector<16x512xbf16> to vector<16x512xf32>
    %53 = arith.addf %52, %6 : vector<16x512xf32>
    %54 = arith.truncf %46 : vector<16x128xf32> to vector<16x128xbf16>
    %cst_25 = arith.constant dense<0.000000e+00> : vector<16x512xf32>
    %55 = tpu.matmul %54, %3, %cst_25 {dimension_numbers = #tpu.dot_dimension_numbers<[1], [0], [0], [1], [0, 0, 1, 1], [], []>} : vector<16x128xbf16>, vector<128x512xbf16>, vector<16x512xf32> -> vector<16x512xf32>
    %56 = arith.addf %53, %55 : vector<16x512xf32>
    %57 = vector.extract_strided_slice %56 {offsets = [0, 0], sizes = [16, 128], strides = [1, 1]} : vector<16x512xf32> to vector<16x128xf32>
    %cst_26 = arith.constant 5.000000e-01 : f32
    %58 = vector.broadcast %cst_26 : f32 to vector<16x128xf32>
    %59 = arith.mulf %58, %57 : vector<16x128xf32>
    %60 = math.tanh %59 : vector<16x128xf32>
    %cst_27 = arith.constant 5.000000e-01 : f32
    %61 = vector.broadcast %cst_27 : f32 to vector<16x128xf32>
    %62 = arith.mulf %61, %60 : vector<16x128xf32>
    %cst_28 = arith.constant 5.000000e-01 : f32
    %63 = vector.broadcast %cst_28 : f32 to vector<16x128xf32>
    %64 = arith.addf %62, %63 : vector<16x128xf32>
    %65 = vector.extract_strided_slice %56 {offsets = [0, 128], sizes = [16, 128], strides = [1, 1]} : vector<16x512xf32> to vector<16x128xf32>
    %cst_29 = arith.constant 5.000000e-01 : f32
    %66 = vector.broadcast %cst_29 : f32 to vector<16x128xf32>
    %67 = arith.mulf %66, %65 : vector<16x128xf32>
    %68 = math.tanh %67 : vector<16x128xf32>
    %cst_30 = arith.constant 5.000000e-01 : f32
    %69 = vector.broadcast %cst_30 : f32 to vector<16x128xf32>
    %70 = arith.mulf %69, %68 : vector<16x128xf32>
    %cst_31 = arith.constant 5.000000e-01 : f32
    %71 = vector.broadcast %cst_31 : f32 to vector<16x128xf32>
    %72 = arith.addf %70, %71 : vector<16x128xf32>
    %73 = vector.extract_strided_slice %56 {offsets = [0, 256], sizes = [16, 128], strides = [1, 1]} : vector<16x512xf32> to vector<16x128xf32>
    %74 = math.tanh %73 : vector<16x128xf32>
    %75 = vector.extract_strided_slice %56 {offsets = [0, 384], sizes = [16, 128], strides = [1, 1]} : vector<16x512xf32> to vector<16x128xf32>
    %cst_32 = arith.constant 5.000000e-01 : f32
    %76 = vector.broadcast %cst_32 : f32 to vector<16x128xf32>
    %77 = arith.mulf %76, %75 : vector<16x128xf32>
    %78 = math.tanh %77 : vector<16x128xf32>
    %cst_33 = arith.constant 5.000000e-01 : f32
    %79 = vector.broadcast %cst_33 : f32 to vector<16x128xf32>
    %80 = arith.mulf %79, %78 : vector<16x128xf32>
    %cst_34 = arith.constant 5.000000e-01 : f32
    %81 = vector.broadcast %cst_34 : f32 to vector<16x128xf32>
    %82 = arith.addf %80, %81 : vector<16x128xf32>
    %83 = arith.mulf %72, %44 : vector<16x128xf32>
    %84 = arith.mulf %64, %74 : vector<16x128xf32>
    %85 = arith.addf %83, %84 : vector<16x128xf32>
    %86 = math.tanh %85 : vector<16x128xf32>
    %87 = arith.mulf %82, %86 : vector<16x128xf32>
    %c1_35 = arith.constant 1 : index
    %c0_36 = arith.constant 0 : index
    %c0_37 = arith.constant 0 : index
    %88 = vector.load %arg7[%c1_35, %c0_36, %c0_37] : memref<8x16x128xf32, #tpu.memory_space<vmem>>, vector<1x16x128xf32>
    %89 = vector.shape_cast %88 : vector<1x16x128xf32> to vector<16x128xf32>
    %90 = vector.shape_cast %87 : vector<16x128xf32> to vector<1x16x128xf32>
    tpu.vector_store %arg7[%c1_35, %c0_36, %c0_37], %90 {strides = array<i32>} : memref<8x16x128xf32, #tpu.memory_space<vmem>>, vector<1x16x128xf32>,
    %c2 = arith.constant 2 : index
    %c0_38 = arith.constant 0 : index
    %c0_39 = arith.constant 0 : index
    %91 = vector.load %arg2[%c2, %c0_38, %c0_39] : memref<8x16x512xbf16, #tpu.memory_space<vmem>>, vector<1x16x512xbf16>
    %92 = vector.shape_cast %91 : vector<1x16x512xbf16> to vector<16x512xbf16>
    %93 = arith.extf %92 : vector<16x512xbf16> to vector<16x512xf32>
    %94 = arith.addf %93, %6 : vector<16x512xf32>
    %95 = arith.truncf %87 : vector<16x128xf32> to vector<16x128xbf16>
    %cst_40 = arith.constant dense<0.000000e+00> : vector<16x512xf32>
    %96 = tpu.matmul %95, %3, %cst_40 {dimension_numbers = #tpu.dot_dimension_numbers<[1], [0], [0], [1], [0, 0, 1, 1], [], []>} : vector<16x128xbf16>, vector<128x512xbf16>, vector<16x512xf32> -> vector<16x512xf32>
    %97 = arith.addf %94, %96 : vector<16x512xf32>
    %98 = vector.extract_strided_slice %97 {offsets = [0, 0], sizes = [16, 128], strides = [1, 1]} : vector<16x512xf32> to vector<16x128xf32>
    %cst_41 = arith.constant 5.000000e-01 : f32
    %99 = vector.broadcast %cst_41 : f32 to vector<16x128xf32>
    %100 = arith.mulf %99, %98 : vector<16x128xf32>
    %101 = math.tanh %100 : vector<16x128xf32>
    %cst_42 = arith.constant 5.000000e-01 : f32
    %102 = vector.broadcast %cst_42 : f32 to vector<16x128xf32>
    %103 = arith.mulf %102, %101 : vector<16x128xf32>
    %cst_43 = arith.constant 5.000000e-01 : f32
    %104 = vector.broadcast %cst_43 : f32 to vector<16x128xf32>
    %105 = arith.addf %103, %104 : vector<16x128xf32>
    %106 = vector.extract_strided_slice %97 {offsets = [0, 128], sizes = [16, 128], strides = [1, 1]} : vector<16x512xf32> to vector<16x128xf32>
    %cst_44 = arith.constant 5.000000e-01 : f32
    %107 = vector.broadcast %cst_44 : f32 to vector<16x128xf32>
    %108 = arith.mulf %107, %106 : vector<16x128xf32>
    %109 = math.tanh %108 : vector<16x128xf32>
    %cst_45 = arith.constant 5.000000e-01 : f32
    %110 = vector.broadcast %cst_45 : f32 to vector<16x128xf32>
    %111 = arith.mulf %110, %109 : vector<16x128xf32>
    %cst_46 = arith.constant 5.000000e-01 : f32
    %112 = vector.broadcast %cst_46 : f32 to vector<16x128xf32>
    %113 = arith.addf %111, %112 : vector<16x128xf32>
    %114 = vector.extract_strided_slice %97 {offsets = [0, 256], sizes = [16, 128], strides = [1, 1]} : vector<16x512xf32> to vector<16x128xf32>
    %115 = math.tanh %114 : vector<16x128xf32>
    %116 = vector.extract_strided_slice %97 {offsets = [0, 384], sizes = [16, 128], strides = [1, 1]} : vector<16x512xf32> to vector<16x128xf32>
    %cst_47 = arith.constant 5.000000e-01 : f32
    %117 = vector.broadcast %cst_47 : f32 to vector<16x128xf32>
    %118 = arith.mulf %117, %116 : vector<16x128xf32>
    %119 = math.tanh %118 : vector<16x128xf32>
    %cst_48 = arith.constant 5.000000e-01 : f32
    %120 = vector.broadcast %cst_48 : f32 to vector<16x128xf32>
    %121 = arith.mulf %120, %119 : vector<16x128xf32>
    %cst_49 = arith.constant 5.000000e-01 : f32
    %122 = vector.broadcast %cst_49 : f32 to vector<16x128xf32>
    %123 = arith.addf %121, %122 : vector<16x128xf32>
    %124 = arith.mulf %113, %85 : vector<16x128xf32>
    %125 = arith.mulf %105, %115 : vector<16x128xf32>
    %126 = arith.addf %124, %125 : vector<16x128xf32>
    %127 = math.tanh %126 : vector<16x128xf32>
    %128 = arith.mulf %123, %127 : vector<16x128xf32>
    %c2_50 = arith.constant 2 : index
    %c0_51 = arith.constant 0 : index
    %c0_52 = arith.constant 0 : index
    %129 = vector.load %arg7[%c2_50, %c0_51, %c0_52] : memref<8x16x128xf32, #tpu.memory_space<vmem>>, vector<1x16x128xf32>
    %130 = vector.shape_cast %129 : vector<1x16x128xf32> to vector<16x128xf32>
    %131 = vector.shape_cast %128 : vector<16x128xf32> to vector<1x16x128xf32>
    tpu.vector_store %arg7[%c2_50, %c0_51, %c0_52], %131 {strides = array<i32>} : memref<8x16x128xf32, #tpu.memory_space<vmem>>, vector<1x16x128xf32>,
    %c3 = arith.constant 3 : index
    %c0_53 = arith.constant 0 : index
    %c0_54 = arith.constant 0 : index
    %132 = vector.load %arg2[%c3, %c0_53, %c0_54] : memref<8x16x512xbf16, #tpu.memory_space<vmem>>, vector<1x16x512xbf16>
    %133 = vector.shape_cast %132 : vector<1x16x512xbf16> to vector<16x512xbf16>
    %134 = arith.extf %133 : vector<16x512xbf16> to vector<16x512xf32>
    %135 = arith.addf %134, %6 : vector<16x512xf32>
    %136 = arith.truncf %128 : vector<16x128xf32> to vector<16x128xbf16>
    %cst_55 = arith.constant dense<0.000000e+00> : vector<16x512xf32>
    %137 = tpu.matmul %136, %3, %cst_55 {dimension_numbers = #tpu.dot_dimension_numbers<[1], [0], [0], [1], [0, 0, 1, 1], [], []>} : vector<16x128xbf16>, vector<128x512xbf16>, vector<16x512xf32> -> vector<16x512xf32>
    %138 = arith.addf %135, %137 : vector<16x512xf32>
    %139 = vector.extract_strided_slice %138 {offsets = [0, 0], sizes = [16, 128], strides = [1, 1]} : vector<16x512xf32> to vector<16x128xf32>
    %cst_56 = arith.constant 5.000000e-01 : f32
    %140 = vector.broadcast %cst_56 : f32 to vector<16x128xf32>
    %141 = arith.mulf %140, %139 : vector<16x128xf32>
    %142 = math.tanh %141 : vector<16x128xf32>
    %cst_57 = arith.constant 5.000000e-01 : f32
    %143 = vector.broadcast %cst_57 : f32 to vector<16x128xf32>
    %144 = arith.mulf %143, %142 : vector<16x128xf32>
    %cst_58 = arith.constant 5.000000e-01 : f32
    %145 = vector.broadcast %cst_58 : f32 to vector<16x128xf32>
    %146 = arith.addf %144, %145 : vector<16x128xf32>
    %147 = vector.extract_strided_slice %138 {offsets = [0, 128], sizes = [16, 128], strides = [1, 1]} : vector<16x512xf32> to vector<16x128xf32>
    %cst_59 = arith.constant 5.000000e-01 : f32
    %148 = vector.broadcast %cst_59 : f32 to vector<16x128xf32>
    %149 = arith.mulf %148, %147 : vector<16x128xf32>
    %150 = math.tanh %149 : vector<16x128xf32>
    %cst_60 = arith.constant 5.000000e-01 : f32
    %151 = vector.broadcast %cst_60 : f32 to vector<16x128xf32>
    %152 = arith.mulf %151, %150 : vector<16x128xf32>
    %cst_61 = arith.constant 5.000000e-01 : f32
    %153 = vector.broadcast %cst_61 : f32 to vector<16x128xf32>
    %154 = arith.addf %152, %153 : vector<16x128xf32>
    %155 = vector.extract_strided_slice %138 {offsets = [0, 256], sizes = [16, 128], strides = [1, 1]} : vector<16x512xf32> to vector<16x128xf32>
    %156 = math.tanh %155 : vector<16x128xf32>
    %157 = vector.extract_strided_slice %138 {offsets = [0, 384], sizes = [16, 128], strides = [1, 1]} : vector<16x512xf32> to vector<16x128xf32>
    %cst_62 = arith.constant 5.000000e-01 : f32
    %158 = vector.broadcast %cst_62 : f32 to vector<16x128xf32>
    %159 = arith.mulf %158, %157 : vector<16x128xf32>
    %160 = math.tanh %159 : vector<16x128xf32>
    %cst_63 = arith.constant 5.000000e-01 : f32
    %161 = vector.broadcast %cst_63 : f32 to vector<16x128xf32>
    %162 = arith.mulf %161, %160 : vector<16x128xf32>
    %cst_64 = arith.constant 5.000000e-01 : f32
    %163 = vector.broadcast %cst_64 : f32 to vector<16x128xf32>
    %164 = arith.addf %162, %163 : vector<16x128xf32>
    %165 = arith.mulf %154, %126 : vector<16x128xf32>
    %166 = arith.mulf %146, %156 : vector<16x128xf32>
    %167 = arith.addf %165, %166 : vector<16x128xf32>
    %168 = math.tanh %167 : vector<16x128xf32>
    %169 = arith.mulf %164, %168 : vector<16x128xf32>
    %c3_65 = arith.constant 3 : index
    %c0_66 = arith.constant 0 : index
    %c0_67 = arith.constant 0 : index
    %170 = vector.load %arg7[%c3_65, %c0_66, %c0_67] : memref<8x16x128xf32, #tpu.memory_space<vmem>>, vector<1x16x128xf32>
    %171 = vector.shape_cast %170 : vector<1x16x128xf32> to vector<16x128xf32>
    %172 = vector.shape_cast %169 : vector<16x128xf32> to vector<1x16x128xf32>
    tpu.vector_store %arg7[%c3_65, %c0_66, %c0_67], %172 {strides = array<i32>} : memref<8x16x128xf32, #tpu.memory_space<vmem>>, vector<1x16x128xf32>,
    %c4 = arith.constant 4 : index
    %c0_68 = arith.constant 0 : index
    %c0_69 = arith.constant 0 : index
    %173 = vector.load %arg2[%c4, %c0_68, %c0_69] : memref<8x16x512xbf16, #tpu.memory_space<vmem>>, vector<1x16x512xbf16>
    %174 = vector.shape_cast %173 : vector<1x16x512xbf16> to vector<16x512xbf16>
    %175 = arith.extf %174 : vector<16x512xbf16> to vector<16x512xf32>
    %176 = arith.addf %175, %6 : vector<16x512xf32>
    %177 = arith.truncf %169 : vector<16x128xf32> to vector<16x128xbf16>
    %cst_70 = arith.constant dense<0.000000e+00> : vector<16x512xf32>
    %178 = tpu.matmul %177, %3, %cst_70 {dimension_numbers = #tpu.dot_dimension_numbers<[1], [0], [0], [1], [0, 0, 1, 1], [], []>} : vector<16x128xbf16>, vector<128x512xbf16>, vector<16x512xf32> -> vector<16x512xf32>
    %179 = arith.addf %176, %178 : vector<16x512xf32>
    %180 = vector.extract_strided_slice %179 {offsets = [0, 0], sizes = [16, 128], strides = [1, 1]} : vector<16x512xf32> to vector<16x128xf32>
    %cst_71 = arith.constant 5.000000e-01 : f32
    %181 = vector.broadcast %cst_71 : f32 to vector<16x128xf32>
    %182 = arith.mulf %181, %180 : vector<16x128xf32>
    %183 = math.tanh %182 : vector<16x128xf32>
    %cst_72 = arith.constant 5.000000e-01 : f32
    %184 = vector.broadcast %cst_72 : f32 to vector<16x128xf32>
    %185 = arith.mulf %184, %183 : vector<16x128xf32>
    %cst_73 = arith.constant 5.000000e-01 : f32
    %186 = vector.broadcast %cst_73 : f32 to vector<16x128xf32>
    %187 = arith.addf %185, %186 : vector<16x128xf32>
    %188 = vector.extract_strided_slice %179 {offsets = [0, 128], sizes = [16, 128], strides = [1, 1]} : vector<16x512xf32> to vector<16x128xf32>
    %cst_74 = arith.constant 5.000000e-01 : f32
    %189 = vector.broadcast %cst_74 : f32 to vector<16x128xf32>
    %190 = arith.mulf %189, %188 : vector<16x128xf32>
    %191 = math.tanh %190 : vector<16x128xf32>
    %cst_75 = arith.constant 5.000000e-01 : f32
    %192 = vector.broadcast %cst_75 : f32 to vector<16x128xf32>
    %193 = arith.mulf %192, %191 : vector<16x128xf32>
    %cst_76 = arith.constant 5.000000e-01 : f32
    %194 = vector.broadcast %cst_76 : f32 to vector<16x128xf32>
    %195 = arith.addf %193, %194 : vector<16x128xf32>
    %196 = vector.extract_strided_slice %179 {offsets = [0, 256], sizes = [16, 128], strides = [1, 1]} : vector<16x512xf32> to vector<16x128xf32>
    %197 = math.tanh %196 : vector<16x128xf32>
    %198 = vector.extract_strided_slice %179 {offsets = [0, 384], sizes = [16, 128], strides = [1, 1]} : vector<16x512xf32> to vector<16x128xf32>
    %cst_77 = arith.constant 5.000000e-01 : f32
    %199 = vector.broadcast %cst_77 : f32 to vector<16x128xf32>
    %200 = arith.mulf %199, %198 : vector<16x128xf32>
    %201 = math.tanh %200 : vector<16x128xf32>
    %cst_78 = arith.constant 5.000000e-01 : f32
    %202 = vector.broadcast %cst_78 : f32 to vector<16x128xf32>
    %203 = arith.mulf %202, %201 : vector<16x128xf32>
    %cst_79 = arith.constant 5.000000e-01 : f32
    %204 = vector.broadcast %cst_79 : f32 to vector<16x128xf32>
    %205 = arith.addf %203, %204 : vector<16x128xf32>
    %206 = arith.mulf %195, %167 : vector<16x128xf32>
    %207 = arith.mulf %187, %197 : vector<16x128xf32>
    %208 = arith.addf %206, %207 : vector<16x128xf32>
    %209 = math.tanh %208 : vector<16x128xf32>
    %210 = arith.mulf %205, %209 : vector<16x128xf32>
    %c4_80 = arith.constant 4 : index
    %c0_81 = arith.constant 0 : index
    %c0_82 = arith.constant 0 : index
    %211 = vector.load %arg7[%c4_80, %c0_81, %c0_82] : memref<8x16x128xf32, #tpu.memory_space<vmem>>, vector<1x16x128xf32>
    %212 = vector.shape_cast %211 : vector<1x16x128xf32> to vector<16x128xf32>
    %213 = vector.shape_cast %210 : vector<16x128xf32> to vector<1x16x128xf32>
    tpu.vector_store %arg7[%c4_80, %c0_81, %c0_82], %213 {strides = array<i32>} : memref<8x16x128xf32, #tpu.memory_space<vmem>>, vector<1x16x128xf32>,
    %c5 = arith.constant 5 : index
    %c0_83 = arith.constant 0 : index
    %c0_84 = arith.constant 0 : index
    %214 = vector.load %arg2[%c5, %c0_83, %c0_84] : memref<8x16x512xbf16, #tpu.memory_space<vmem>>, vector<1x16x512xbf16>
    %215 = vector.shape_cast %214 : vector<1x16x512xbf16> to vector<16x512xbf16>
    %216 = arith.extf %215 : vector<16x512xbf16> to vector<16x512xf32>
    %217 = arith.addf %216, %6 : vector<16x512xf32>
    %218 = arith.truncf %210 : vector<16x128xf32> to vector<16x128xbf16>
    %cst_85 = arith.constant dense<0.000000e+00> : vector<16x512xf32>
    %219 = tpu.matmul %218, %3, %cst_85 {dimension_numbers = #tpu.dot_dimension_numbers<[1], [0], [0], [1], [0, 0, 1, 1], [], []>} : vector<16x128xbf16>, vector<128x512xbf16>, vector<16x512xf32> -> vector<16x512xf32>
    %220 = arith.addf %217, %219 : vector<16x512xf32>
    %221 = vector.extract_strided_slice %220 {offsets = [0, 0], sizes = [16, 128], strides = [1, 1]} : vector<16x512xf32> to vector<16x128xf32>
    %cst_86 = arith.constant 5.000000e-01 : f32
    %222 = vector.broadcast %cst_86 : f32 to vector<16x128xf32>
    %223 = arith.mulf %222, %221 : vector<16x128xf32>
    %224 = math.tanh %223 : vector<16x128xf32>
    %cst_87 = arith.constant 5.000000e-01 : f32
    %225 = vector.broadcast %cst_87 : f32 to vector<16x128xf32>
    %226 = arith.mulf %225, %224 : vector<16x128xf32>
    %cst_88 = arith.constant 5.000000e-01 : f32
    %227 = vector.broadcast %cst_88 : f32 to vector<16x128xf32>
    %228 = arith.addf %226, %227 : vector<16x128xf32>
    %229 = vector.extract_strided_slice %220 {offsets = [0, 128], sizes = [16, 128], strides = [1, 1]} : vector<16x512xf32> to vector<16x128xf32>
    %cst_89 = arith.constant 5.000000e-01 : f32
    %230 = vector.broadcast %cst_89 : f32 to vector<16x128xf32>
    %231 = arith.mulf %230, %229 : vector<16x128xf32>
    %232 = math.tanh %231 : vector<16x128xf32>
    %cst_90 = arith.constant 5.000000e-01 : f32
    %233 = vector.broadcast %cst_90 : f32 to vector<16x128xf32>
    %234 = arith.mulf %233, %232 : vector<16x128xf32>
    %cst_91 = arith.constant 5.000000e-01 : f32
    %235 = vector.broadcast %cst_91 : f32 to vector<16x128xf32>
    %236 = arith.addf %234, %235 : vector<16x128xf32>
    %237 = vector.extract_strided_slice %220 {offsets = [0, 256], sizes = [16, 128], strides = [1, 1]} : vector<16x512xf32> to vector<16x128xf32>
    %238 = math.tanh %237 : vector<16x128xf32>
    %239 = vector.extract_strided_slice %220 {offsets = [0, 384], sizes = [16, 128], strides = [1, 1]} : vector<16x512xf32> to vector<16x128xf32>
    %cst_92 = arith.constant 5.000000e-01 : f32
    %240 = vector.broadcast %cst_92 : f32 to vector<16x128xf32>
    %241 = arith.mulf %240, %239 : vector<16x128xf32>
    %242 = math.tanh %241 : vector<16x128xf32>
    %cst_93 = arith.constant 5.000000e-01 : f32
    %243 = vector.broadcast %cst_93 : f32 to vector<16x128xf32>
    %244 = arith.mulf %243, %242 : vector<16x128xf32>
    %cst_94 = arith.constant 5.000000e-01 : f32
    %245 = vector.broadcast %cst_94 : f32 to vector<16x128xf32>
    %246 = arith.addf %244, %245 : vector<16x128xf32>
    %247 = arith.mulf %236, %208 : vector<16x128xf32>
    %248 = arith.mulf %228, %238 : vector<16x128xf32>
    %249 = arith.addf %247, %248 : vector<16x128xf32>
    %250 = math.tanh %249 : vector<16x128xf32>
    %251 = arith.mulf %246, %250 : vector<16x128xf32>
    %c5_95 = arith.constant 5 : index
    %c0_96 = arith.constant 0 : index
    %c0_97 = arith.constant 0 : index
    %252 = vector.load %arg7[%c5_95, %c0_96, %c0_97] : memref<8x16x128xf32, #tpu.memory_space<vmem>>, vector<1x16x128xf32>
    %253 = vector.shape_cast %252 : vector<1x16x128xf32> to vector<16x128xf32>
    %254 = vector.shape_cast %251 : vector<16x128xf32> to vector<1x16x128xf32>
    tpu.vector_store %arg7[%c5_95, %c0_96, %c0_97], %254 {strides = array<i32>} : memref<8x16x128xf32, #tpu.memory_space<vmem>>, vector<1x16x128xf32>,
    %c6 = arith.constant 6 : index
    %c0_98 = arith.constant 0 : index
    %c0_99 = arith.constant 0 : index
    %255 = vector.load %arg2[%c6, %c0_98, %c0_99] : memref<8x16x512xbf16, #tpu.memory_space<vmem>>, vector<1x16x512xbf16>
    %256 = vector.shape_cast %255 : vector<1x16x512xbf16> to vector<16x512xbf16>
    %257 = arith.extf %256 : vector<16x512xbf16> to vector<16x512xf32>
    %258 = arith.addf %257, %6 : vector<16x512xf32>
    %259 = arith.truncf %251 : vector<16x128xf32> to vector<16x128xbf16>
    %cst_100 = arith.constant dense<0.000000e+00> : vector<16x512xf32>
    %260 = tpu.matmul %259, %3, %cst_100 {dimension_numbers = #tpu.dot_dimension_numbers<[1], [0], [0], [1], [0, 0, 1, 1], [], []>} : vector<16x128xbf16>, vector<128x512xbf16>, vector<16x512xf32> -> vector<16x512xf32>
    %261 = arith.addf %258, %260 : vector<16x512xf32>
    %262 = vector.extract_strided_slice %261 {offsets = [0, 0], sizes = [16, 128], strides = [1, 1]} : vector<16x512xf32> to vector<16x128xf32>
    %cst_101 = arith.constant 5.000000e-01 : f32
    %263 = vector.broadcast %cst_101 : f32 to vector<16x128xf32>
    %264 = arith.mulf %263, %262 : vector<16x128xf32>
    %265 = math.tanh %264 : vector<16x128xf32>
    %cst_102 = arith.constant 5.000000e-01 : f32
    %266 = vector.broadcast %cst_102 : f32 to vector<16x128xf32>
    %267 = arith.mulf %266, %265 : vector<16x128xf32>
    %cst_103 = arith.constant 5.000000e-01 : f32
    %268 = vector.broadcast %cst_103 : f32 to vector<16x128xf32>
    %269 = arith.addf %267, %268 : vector<16x128xf32>
    %270 = vector.extract_strided_slice %261 {offsets = [0, 128], sizes = [16, 128], strides = [1, 1]} : vector<16x512xf32> to vector<16x128xf32>
    %cst_104 = arith.constant 5.000000e-01 : f32
    %271 = vector.broadcast %cst_104 : f32 to vector<16x128xf32>
    %272 = arith.mulf %271, %270 : vector<16x128xf32>
    %273 = math.tanh %272 : vector<16x128xf32>
    %cst_105 = arith.constant 5.000000e-01 : f32
    %274 = vector.broadcast %cst_105 : f32 to vector<16x128xf32>
    %275 = arith.mulf %274, %273 : vector<16x128xf32>
    %cst_106 = arith.constant 5.000000e-01 : f32
    %276 = vector.broadcast %cst_106 : f32 to vector<16x128xf32>
    %277 = arith.addf %275, %276 : vector<16x128xf32>
    %278 = vector.extract_strided_slice %261 {offsets = [0, 256], sizes = [16, 128], strides = [1, 1]} : vector<16x512xf32> to vector<16x128xf32>
    %279 = math.tanh %278 : vector<16x128xf32>
    %280 = vector.extract_strided_slice %261 {offsets = [0, 384], sizes = [16, 128], strides = [1, 1]} : vector<16x512xf32> to vector<16x128xf32>
    %cst_107 = arith.constant 5.000000e-01 : f32
    %281 = vector.broadcast %cst_107 : f32 to vector<16x128xf32>
    %282 = arith.mulf %281, %280 : vector<16x128xf32>
    %283 = math.tanh %282 : vector<16x128xf32>
    %cst_108 = arith.constant 5.000000e-01 : f32
    %284 = vector.broadcast %cst_108 : f32 to vector<16x128xf32>
    %285 = arith.mulf %284, %283 : vector<16x128xf32>
    %cst_109 = arith.constant 5.000000e-01 : f32
    %286 = vector.broadcast %cst_109 : f32 to vector<16x128xf32>
    %287 = arith.addf %285, %286 : vector<16x128xf32>
    %288 = arith.mulf %277, %249 : vector<16x128xf32>
    %289 = arith.mulf %269, %279 : vector<16x128xf32>
    %290 = arith.addf %288, %289 : vector<16x128xf32>
    %291 = math.tanh %290 : vector<16x128xf32>
    %292 = arith.mulf %287, %291 : vector<16x128xf32>
    %c6_110 = arith.constant 6 : index
    %c0_111 = arith.constant 0 : index
    %c0_112 = arith.constant 0 : index
    %293 = vector.load %arg7[%c6_110, %c0_111, %c0_112] : memref<8x16x128xf32, #tpu.memory_space<vmem>>, vector<1x16x128xf32>
    %294 = vector.shape_cast %293 : vector<1x16x128xf32> to vector<16x128xf32>
    %295 = vector.shape_cast %292 : vector<16x128xf32> to vector<1x16x128xf32>
    tpu.vector_store %arg7[%c6_110, %c0_111, %c0_112], %295 {strides = array<i32>} : memref<8x16x128xf32, #tpu.memory_space<vmem>>, vector<1x16x128xf32>,
    %c7 = arith.constant 7 : index
    %c0_113 = arith.constant 0 : index
    %c0_114 = arith.constant 0 : index
    %296 = vector.load %arg2[%c7, %c0_113, %c0_114] : memref<8x16x512xbf16, #tpu.memory_space<vmem>>, vector<1x16x512xbf16>
    %297 = vector.shape_cast %296 : vector<1x16x512xbf16> to vector<16x512xbf16>
    %298 = arith.extf %297 : vector<16x512xbf16> to vector<16x512xf32>
    %299 = arith.addf %298, %6 : vector<16x512xf32>
    %300 = arith.truncf %292 : vector<16x128xf32> to vector<16x128xbf16>
    %cst_115 = arith.constant dense<0.000000e+00> : vector<16x512xf32>
    %301 = tpu.matmul %300, %3, %cst_115 {dimension_numbers = #tpu.dot_dimension_numbers<[1], [0], [0], [1], [0, 0, 1, 1], [], []>} : vector<16x128xbf16>, vector<128x512xbf16>, vector<16x512xf32> -> vector<16x512xf32>
    %302 = arith.addf %299, %301 : vector<16x512xf32>
    %303 = vector.extract_strided_slice %302 {offsets = [0, 0], sizes = [16, 128], strides = [1, 1]} : vector<16x512xf32> to vector<16x128xf32>
    %cst_116 = arith.constant 5.000000e-01 : f32
    %304 = vector.broadcast %cst_116 : f32 to vector<16x128xf32>
    %305 = arith.mulf %304, %303 : vector<16x128xf32>
    %306 = math.tanh %305 : vector<16x128xf32>
    %cst_117 = arith.constant 5.000000e-01 : f32
    %307 = vector.broadcast %cst_117 : f32 to vector<16x128xf32>
    %308 = arith.mulf %307, %306 : vector<16x128xf32>
    %cst_118 = arith.constant 5.000000e-01 : f32
    %309 = vector.broadcast %cst_118 : f32 to vector<16x128xf32>
    %310 = arith.addf %308, %309 : vector<16x128xf32>
    %311 = vector.extract_strided_slice %302 {offsets = [0, 128], sizes = [16, 128], strides = [1, 1]} : vector<16x512xf32> to vector<16x128xf32>
    %cst_119 = arith.constant 5.000000e-01 : f32
    %312 = vector.broadcast %cst_119 : f32 to vector<16x128xf32>
    %313 = arith.mulf %312, %311 : vector<16x128xf32>
    %314 = math.tanh %313 : vector<16x128xf32>
    %cst_120 = arith.constant 5.000000e-01 : f32
    %315 = vector.broadcast %cst_120 : f32 to vector<16x128xf32>
    %316 = arith.mulf %315, %314 : vector<16x128xf32>
    %cst_121 = arith.constant 5.000000e-01 : f32
    %317 = vector.broadcast %cst_121 : f32 to vector<16x128xf32>
    %318 = arith.addf %316, %317 : vector<16x128xf32>
    %319 = vector.extract_strided_slice %302 {offsets = [0, 256], sizes = [16, 128], strides = [1, 1]} : vector<16x512xf32> to vector<16x128xf32>
    %320 = math.tanh %319 : vector<16x128xf32>
    %321 = vector.extract_strided_slice %302 {offsets = [0, 384], sizes = [16, 128], strides = [1, 1]} : vector<16x512xf32> to vector<16x128xf32>
    %cst_122 = arith.constant 5.000000e-01 : f32
    %322 = vector.broadcast %cst_122 : f32 to vector<16x128xf32>
    %323 = arith.mulf %322, %321 : vector<16x128xf32>
    %324 = math.tanh %323 : vector<16x128xf32>
    %cst_123 = arith.constant 5.000000e-01 : f32
    %325 = vector.broadcast %cst_123 : f32 to vector<16x128xf32>
    %326 = arith.mulf %325, %324 : vector<16x128xf32>
    %cst_124 = arith.constant 5.000000e-01 : f32
    %327 = vector.broadcast %cst_124 : f32 to vector<16x128xf32>
    %328 = arith.addf %326, %327 : vector<16x128xf32>
    %329 = arith.mulf %318, %290 : vector<16x128xf32>
    %330 = arith.mulf %310, %320 : vector<16x128xf32>
    %331 = arith.addf %329, %330 : vector<16x128xf32>
    %332 = math.tanh %331 : vector<16x128xf32>
    %333 = arith.mulf %328, %332 : vector<16x128xf32>
    %c7_125 = arith.constant 7 : index
    %c0_126 = arith.constant 0 : index
    %c0_127 = arith.constant 0 : index
    %334 = vector.load %arg7[%c7_125, %c0_126, %c0_127] : memref<8x16x128xf32, #tpu.memory_space<vmem>>, vector<1x16x128xf32>
    %335 = vector.shape_cast %334 : vector<1x16x128xf32> to vector<16x128xf32>
    %336 = vector.shape_cast %333 : vector<16x128xf32> to vector<1x16x128xf32>
    tpu.vector_store %arg7[%c7_125, %c0_126, %c0_127], %336 {strides = array<i32>} : memref<8x16x128xf32, #tpu.memory_space<vmem>>, vector<1x16x128xf32>,
    %c0_128 = arith.constant 0 : index
    %c0_129 = arith.constant 0 : index
    %337 = vector.load %arg11[%c0_128, %c0_129] : memref<16x128xf32, #tpu.memory_space<vmem>>, vector<16x128xf32>
    tpu.vector_store %arg11[%c0_128, %c0_129], %333 {strides = array<i32>} : memref<16x128xf32, #tpu.memory_space<vmem>>, vector<16x128xf32>,
    %c0_130 = arith.constant 0 : index
    %c0_131 = arith.constant 0 : index
    %338 = vector.load %arg12[%c0_130, %c0_131] : memref<16x128xf32, #tpu.memory_space<vmem>>, vector<16x128xf32>
    tpu.vector_store %arg12[%c0_130, %c0_131], %331 {strides = array<i32>} : memref<16x128xf32, #tpu.memory_space<vmem>>, vector<16x128xf32>,
    %c0_i32_132 = arith.constant 0 : i32
    %339 = arith.cmpi eq, %arg1, %c0_i32_132 : i32
    %340 = arith.extui %339 : i1 to i32
    %c0_i32_133 = arith.constant 0 : i32
    %341 = arith.cmpi ne, %340, %c0_i32_133 : i32
    scf.if %341 {
      %c0_134 = arith.constant 0 : index
      %c0_135 = arith.constant 0 : index
      %342 = vector.load %arg8[%c0_134, %c0_135] : memref<16x128xf32, #tpu.memory_space<vmem>>, vector<16x128xf32>
      tpu.vector_store %arg8[%c0_134, %c0_135], %333 {strides = array<i32>} : memref<16x128xf32, #tpu.memory_space<vmem>>, vector<16x128xf32>,
      %c0_136 = arith.constant 0 : index
      %c0_137 = arith.constant 0 : index
      %343 = vector.load %arg9[%c0_136, %c0_137] : memref<16x128xf32, #tpu.memory_space<vmem>>, vector<16x128xf32>
      tpu.vector_store %arg9[%c0_136, %c0_137], %331 {strides = array<i32>} : memref<16x128xf32, #tpu.memory_space<vmem>>, vector<16x128xf32>,
    } else {
    }
    return
  }
  func.func @transform_0(%arg0: i32, %arg1: i32) -> (i32, i32, i32) {
    %c0_i32 = arith.constant 0 : i32
    %c0_i32_0 = arith.constant 0 : i32
    return %arg1, %arg0, %c0_i32 : i32, i32, i32
  }
  func.func @transform_1(%arg0: i32, %arg1: i32) -> (i32, i32) {
    %c0_i32 = arith.constant 0 : i32
    %c0_i32_0 = arith.constant 0 : i32
    %c0_i32_1 = arith.constant 0 : i32
    return %c0_i32, %c0_i32_0 : i32, i32
  }
  func.func @transform_2(%arg0: i32, %arg1: i32) -> (i32, i32) {
    %c0_i32 = arith.constant 0 : i32
    %c0_i32_0 = arith.constant 0 : i32
    return %arg0, %c0_i32 : i32, i32
  }
  func.func @transform_3(%arg0: i32, %arg1: i32) -> (i32, i32) {
    %c0_i32 = arith.constant 0 : i32
    %c0_i32_0 = arith.constant 0 : i32
    return %arg0, %c0_i32 : i32, i32
  }
  func.func @transform_5(%arg0: i32, %arg1: i32) -> (i32, i32, i32) {
    %c0_i32 = arith.constant 0 : i32
    %c0_i32_0 = arith.constant 0 : i32
    return %arg1, %arg0, %c0_i32 : i32, i32, i32
  }
  func.func @transform_6(%arg0: i32, %arg1: i32) -> (i32, i32) {
    %c0_i32 = arith.constant 0 : i32
    %c0_i32_0 = arith.constant 0 : i32
    return %arg0, %c0_i32 : i32, i32
  }
  func.func @transform_7(%arg0: i32, %arg1: i32) -> (i32, i32) {
    %c0_i32 = arith.constant 0 : i32
    %c0_i32_0 = arith.constant 0 : i32
    return %arg0, %c0_i32 : i32, i32
  }
}

</mosaic_0001>

<llo_original>
// kernel: _lstm_forward_impl.1
$region0: #{_lstm_forward_impl.1}
  #allocation0 [shape = 'u32[]', space=smem, size = 0x4, offset = 0x4, fixed_abs, tag = 'smem constant byte address 0x4 - core index']
  #allocation1 [shape = 'u32[144,128]{1,0:T(1,128)}', space=vmem, size = 0x12000, scoped, tag = 'internal scratch']
  #allocation2 [shape = 'bf16[128,512]{1,0:T(16,128)(2,1)}', space=vmem, size = 0x20000, scoped, tag = 'scratch operand']
  #allocation3 [shape = 'f32[16,128]{1,0:T(8,128)}', space=vmem, size = 0x2000, scoped, tag = 'scratch operand']
  #allocation4 [shape = 'f32[16,128]{1,0:T(8,128)}', space=vmem, size = 0x2000, scoped, tag = 'scratch operand']
  #allocation6 [shape = 's32[]', space=sflag, size = 0x4, offset = 0, fixed_abs, tag = 'sflag constant byte address 0x0 - dummy sync flag']
  %s0 = inlined_call_operand.vmem [shape: bf16[8,16,512], index: 0, kind: input, shape index: {}]
  %s1 = inlined_call_operand.vmem [shape: f32[1,512], index: 1, kind: input, shape index: {}]
  %s2 = inlined_call_operand.vmem [shape: f32[16,128], index: 2, kind: input, shape index: {}]
  %s3 = inlined_call_operand.vmem [shape: f32[16,128], index: 3, kind: input, shape index: {}]
  %s4 = inlined_call_operand.vmem [shape: bf16[128,512], index: 4, kind: input, shape index: {}]
  %s5 = inlined_call_operand.vmem [shape: f32[8,16,128], index: 5, kind: output, shape index: {0}]
  %s6 = inlined_call_operand.vmem [shape: f32[16,128], index: 6, kind: output, shape index: {1}]
  %s7 = inlined_call_operand.vmem [shape: f32[16,128], index: 7, kind: output, shape index: {2}]
  %8 = xla_tuple %s5, %s6, %s7
  %s9 = sld [smem:[#allocation0]]
  $region88: #{_lstm_forward_impl.1} parent=0
    _
  %s11 = ssub.s32 1, %s9
  %s12 = scalar_select 0, %s11, %s9
  // Predicated region
  $region2: #{_lstm_forward_impl.1} parent=0 // pred_check
    _
  $region3: #{_lstm_forward_impl.1} parent=0 // pred_check_branch
    %14 = sbr.rel (0) target = $region5
  $region4: #{_lstm_forward_impl.1} parent=0 // pred_region
    _
  $region5: #{_lstm_forward_impl.1} parent=0 // pred_fallthru
    _
  // Predicated region
  $region6: #{_lstm_forward_impl.1} parent=0 // pred_check
    _
  $region7: #{_lstm_forward_impl.1} parent=0 // pred_check_branch
    %16 = sbr.rel (0) target = $region9
  $region8: #{_lstm_forward_impl.1} parent=0 // pred_region
    _
  $region9: #{_lstm_forward_impl.1} parent=0 // pred_fallthru
    _
  // Predicated region
  $region10: #{_lstm_forward_impl.1} parent=0 // pred_check
    _
  $region11: #{_lstm_forward_impl.1} parent=0 // pred_check_branch
    %18 = sbr.rel (0) target = $region13
  $region12: #{_lstm_forward_impl.1} parent=0 // pred_region
    _
  $region13: #{_lstm_forward_impl.1} parent=0 // pred_fallthru
    _
  // Predicated region
  $region14: #{_lstm_forward_impl.1} parent=0 // pred_check
    _
  $region15: #{_lstm_forward_impl.1} parent=0 // pred_check_branch
    %20 = sbr.rel (0) target = $region17
  $region16: #{_lstm_forward_impl.1} parent=0 // pred_region
    _
  $region17: #{_lstm_forward_impl.1} parent=0 // pred_fallthru
    _
  %p22 = scmp.eq.s32.totalorder 0, 0
  // Predicated region
  $region18: #{_lstm_forward_impl.1} parent=0 // pred_check
    %p23 = pneg %p22
  $region19: #{_lstm_forward_impl.1} parent=0 // pred_check_branch
    %25 = sbr.rel (%p23) target = $region21
  $region20: #{_lstm_forward_impl.1} parent=0 // pred_region
    $region22: #{_lstm_forward_impl.1} parent=20
      #allocation5 [shape = 's32[1]{0}', space=sflag, size = 0x4, scoped, tag = 'scoped memory for _lstm_forward_impl.1']
      %p27 = scmp.lt.u32.totalorder 4, 8
      %p28 = pneg %p27
      // Predicated region
      $region23: #{_lstm_forward_impl.1} parent=22 // pred_check
        _
      $region24: #{_lstm_forward_impl.1} parent=22 // pred_check_branch
        %30 = sbr.rel (%p27) target = $region26
      $region25: #{_lstm_forward_impl.1} parent=22 // pred_region
        %s171 = sand.u32 4, 7
        %p172 = scmp.eq.s32.totalorder %s171, 0
        %p173 = pneg %p172
        // Predicated region
        $region38: #{_lstm_forward_impl.1} parent=25 // pred_check
          _
        $region39: #{_lstm_forward_impl.1} parent=25 // pred_check_branch
          %175 = sbr.rel (%p172) target = $region41
        $region40: #{_lstm_forward_impl.1} parent=25 // pred_region
          %s176 = sand.u32 4, 7
          %s177 = ssub.s32 4, %s176
          %s178 = scalar_lea.vmem %s4, %s177
          %s179 = ssub.s32 4, %s176
          %s180 = scalar_lea.vmem [#allocation2], %s179
          loop: start=0, step=1, limit=1
          $region42: #{_lstm_forward_impl.1} parent=40 // loop_pre_header
            _
          $region43: #{_lstm_forward_impl.1} parent=40 // loop_header
            %s182 = sphi 0, %s186
            %p183 = scmp.ge.s32.totalorder %s182, 1
            %s187 = sphi %s4, %s4
            %s188 = sphi [#allocation2], [#allocation2]
          $region44: #{_lstm_forward_impl.1} parent=40 // loop_header_branch
            %185 = sbr.rel (%p183) target = $region48
          $region45: #{_lstm_forward_impl.1} parent=40 // loop_body
            _
          $region46: #{_lstm_forward_impl.1} parent=40 // loop_footer
            %s186 = sadd.s32 1, %s182
          $region47: #{_lstm_forward_impl.1} parent=40 // loop_footer_branch
            %181 = sbr.rel target = $region43
          $region48: #{_lstm_forward_impl.1} parent=40 // loop_exit
            _
          %s189 = sshllo.u32 0, %s176
          loop: start=0, step=1, limit=1
          $region49: #{_lstm_forward_impl.1} parent=40 // loop_pre_header
            _
          $region50: #{_lstm_forward_impl.1} parent=40 // loop_header
            %s191 = sphi 0, %s195
            %p192 = scmp.ge.s32.totalorder %s191, 1
            %s196 = sphi %s178, %s178
            %s197 = sphi %s180, %s180
          $region51: #{_lstm_forward_impl.1} parent=40 // loop_header_branch
            %194 = sbr.rel (%p192) target = $region55
          $region52: #{_lstm_forward_impl.1} parent=40 // loop_body
            %v198 = vld [vmem:[%s196] sm:%s189]
            %199 = vst [vmem:[%s197] sm:%s189] %v198
            %v200 = vld [vmem:[%s196 + $0x10] sm:%s189]
            %201 = vst [vmem:[%s197 + $0x4] sm:%s189] %v200
            %v202 = vld [vmem:[%s196 + $0x4] sm:%s189]
            %203 = vst [vmem:[%s197 + $0x8] sm:%s189] %v202
            %v204 = vld [vmem:[%s196 + $0x14] sm:%s189]
            %205 = vst [vmem:[%s197 + $0xc] sm:%s189] %v204
            %v206 = vld [vmem:[%s196 + $0x8] sm:%s189]
            %207 = vst [vmem:[%s197 + $0x10] sm:%s189] %v206
            %v208 = vld [vmem:[%s196 + $0x18] sm:%s189]
            %209 = vst [vmem:[%s197 + $0x14] sm:%s189] %v208
            %v210 = vld [vmem:[%s196 + $0xc] sm:%s189]
            %211 = vst [vmem:[%s197 + $0x18] sm:%s189] %v210
            %v212 = vld [vmem:[%s196 + $0x1c] sm:%s189]
            %213 = vst [vmem:[%s197 + $0x1c] sm:%s189] %v212
            %v214 = vld [vmem:[%s196 + $0x20] sm:%s189]
            %215 = vst [vmem:[%s197 + $0x20] sm:%s189] %v214
            %v216 = vld [vmem:[%s196 + $0x30] sm:%s189]
            %217 = vst [vmem:[%s197 + $0x24] sm:%s189] %v216
            %v218 = vld [vmem:[%s196 + $0x24] sm:%s189]
            %219 = vst [vmem:[%s197 + $0x28] sm:%s189] %v218
            %v220 = vld [vmem:[%s196 + $0x34] sm:%s189]
            %221 = vst [vmem:[%s197 + $0x2c] sm:%s189] %v220
            %v222 = vld [vmem:[%s196 + $0x28] sm:%s189]
            %223 = vst [vmem:[%s197 + $0x30] sm:%s189] %v222
            %v224 = vld [vmem:[%s196 + $0x38] sm:%s189]
            %225 = vst [vmem:[%s197 + $0x34] sm:%s189] %v224
            %v226 = vld [vmem:[%s196 + $0x2c] sm:%s189]
            %227 = vst [vmem:[%s197 + $0x38] sm:%s189] %v226
            %v228 = vld [vmem:[%s196 + $0x3c] sm:%s189]
            %229 = vst [vmem:[%s197 + $0x3c] sm:%s189] %v228
            %v230 = vld [vmem:[%s196 + $0x40] sm:%s189]
            %231 = vst [vmem:[%s197 + $0x40] sm:%s189] %v230
            %v232 = vld [vmem:[%s196 + $0x50] sm:%s189]
            %233 = vst [vmem:[%s197 + $0x44] sm:%s189] %v232
            %v234 = vld [vmem:[%s196 + $0x44] sm:%s189]
            %235 = vst [vmem:[%s197 + $0x48] sm:%s189] %v234
            %v236 = vld [vmem:[%s196 + $0x54] sm:%s189]
            %237 = vst [vmem:[%s197 + $0x4c] sm:%s189] %v236
            %v238 = vld [vmem:[%s196 + $0x48] sm:%s189]
            %239 = vst [vmem:[%s197 + $0x50] sm:%s189] %v238
            %v240 = vld [vmem:[%s196 + $0x58] sm:%s189]
            %241 = vst [vmem:[%s197 + $0x54] sm:%s189] %v240
            %v242 = vld [vmem:[%s196 + $0x4c] sm:%s189]
            %243 = vst [vmem:[%s197 + $0x58] sm:%s189] %v242
            %v244 = vld [vmem:[%s196 + $0x5c] sm:%s189]
            %245 = vst [vmem:[%s197 + $0x5c] sm:%s189] %v244
            %v246 = vld [vmem:[%s196 + $0x60] sm:%s189]
            %247 = vst [vmem:[%s197 + $0x60] sm:%s189] %v246
            %v248 = vld [vmem:[%s196 + $0x70] sm:%s189]
            %249 = vst [vmem:[%s197 + $0x64] sm:%s189] %v248
            %v250 = vld [vmem:[%s196 + $0x64] sm:%s189]
            %251 = vst [vmem:[%s197 + $0x68] sm:%s189] %v250
            %v252 = vld [vmem:[%s196 + $0x74] sm:%s189]
            %253 = vst [vmem:[%s197 + $0x6c] sm:%s189] %v252
            %v254 = vld [vmem:[%s196 + $0x68] sm:%s189]
            %255 = vst [vmem:[%s197 + $0x70] sm:%s189] %v254
            %v256 = vld [vmem:[%s196 + $0x78] sm:%s189]
            %257 = vst [vmem:[%s197 + $0x74] sm:%s189] %v256
            %v258 = vld [vmem:[%s196 + $0x6c] sm:%s189]
            %259 = vst [vmem:[%s197 + $0x78] sm:%s189] %v258
            %v260 = vld [vmem:[%s196 + $0x7c] sm:%s189]
            %261 = vst [vmem:[%s197 + $0x7c] sm:%s189] %v260
            %v262 = vld [vmem:[%s196 + $0x80] sm:%s189]
            %263 = vst [vmem:[%s197 + $0x80] sm:%s189] %v262
            %v264 = vld [vmem:[%s196 + $0x90] sm:%s189]
            %265 = vst [vmem:[%s197 + $0x84] sm:%s189] %v264
            %v266 = vld [vmem:[%s196 + $0x84] sm:%s189]
            %267 = vst [vmem:[%s197 + $0x88] sm:%s189] %v266
            %v268 = vld [vmem:[%s196 + $0x94] sm:%s189]
            %269 = vst [vmem:[%s197 + $0x8c] sm:%s189] %v268
            %v270 = vld [vmem:[%s196 + $0x88] sm:%s189]
            %271 = vst [vmem:[%s197 + $0x90] sm:%s189] %v270
            %v272 = vld [vmem:[%s196 + $0x98] sm:%s189]
            %273 = vst [vmem:[%s197 + $0x94] sm:%s189] %v272
            %v274 = vld [vmem:[%s196 + $0x8c] sm:%s189]
            %275 = vst [vmem:[%s197 + $0x98] sm:%s189] %v274
            %v276 = vld [vmem:[%s196 + $0x9c] sm:%s189]
            %277 = vst [vmem:[%s197 + $0x9c] sm:%s189] %v276
            %v278 = vld [vmem:[%s196 + $0xa0] sm:%s189]
            %279 = vst [vmem:[%s197 + $0xa0] sm:%s189] %v278
            %v280 = vld [vmem:[%s196 + $0xb0] sm:%s189]
            %281 = vst [vmem:[%s197 + $0xa4] sm:%s189] %v280
            %v282 = vld [vmem:[%s196 + $0xa4] sm:%s189]
            %283 = vst [vmem:[%s197 + $0xa8] sm:%s189] %v282
            %v284 = vld [vmem:[%s196 + $0xb4] sm:%s189]
            %285 = vst [vmem:[%s197 + $0xac] sm:%s189] %v284
            %v286 = vld [vmem:[%s196 + $0xa8] sm:%s189]
            %287 = vst [vmem:[%s197 + $0xb0] sm:%s189] %v286
            %v288 = vld [vmem:[%s196 + $0xb8] sm:%s189]
            %289 = vst [vmem:[%s197 + $0xb4] sm:%s189] %v288
            %v290 = vld [vmem:[%s196 + $0xac] sm:%s189]
            %291 = vst [vmem:[%s197 + $0xb8] sm:%s189] %v290
            %v292 = vld [vmem:[%s196 + $0xbc] sm:%s189]
            %293 = vst [vmem:[%s197 + $0xbc] sm:%s189] %v292
            %v294 = vld [vmem:[%s196 + $0xc0] sm:%s189]
            %295 = vst [vmem:[%s197 + $0xc0] sm:%s189] %v294
            %v296 = vld [vmem:[%s196 + $0xd0] sm:%s189]
            %297 = vst [vmem:[%s197 + $0xc4] sm:%s189] %v296
            %v298 = vld [vmem:[%s196 + $0xc4] sm:%s189]
            %299 = vst [vmem:[%s197 + $0xc8] sm:%s189] %v298
            %v300 = vld [vmem:[%s196 + $0xd4] sm:%s189]
            %301 = vst [vmem:[%s197 + $0xcc] sm:%s189] %v300
            %v302 = vld [vmem:[%s196 + $0xc8] sm:%s189]
            %303 = vst [vmem:[%s197 + $0xd0] sm:%s189] %v302
            %v304 = vld [vmem:[%s196 + $0xd8] sm:%s189]
            %305 = vst [vmem:[%s197 + $0xd4] sm:%s189] %v304
            %v306 = vld [vmem:[%s196 + $0xcc] sm:%s189]
            %307 = vst [vmem:[%s197 + $0xd8] sm:%s189] %v306
            %v308 = vld [vmem:[%s196 + $0xdc] sm:%s189]
            %309 = vst [vmem:[%s197 + $0xdc] sm:%s189] %v308
            %v310 = vld [vmem:[%s196 + $0xe0] sm:%s189]
            %311 = vst [vmem:[%s197 + $0xe0] sm:%s189] %v310
            %v312 = vld [vmem:[%s196 + $0xf0] sm:%s189]
            %313 = vst [vmem:[%s197 + $0xe4] sm:%s189] %v312
            %v314 = vld [vmem:[%s196 + $0xe4] sm:%s189]
            %315 = vst [vmem:[%s197 + $0xe8] sm:%s189] %v314
            %v316 = vld [vmem:[%s196 + $0xf4] sm:%s189]
            %317 = vst [vmem:[%s197 + $0xec] sm:%s189] %v316
            %v318 = vld [vmem:[%s196 + $0xe8] sm:%s189]
            %319 = vst [vmem:[%s197 + $0xf0] sm:%s189] %v318
            %v320 = vld [vmem:[%s196 + $0xf8] sm:%s189]
            %321 = vst [vmem:[%s197 + $0xf4] sm:%s189] %v320
            %v322 = vld [vmem:[%s196 + $0xec] sm:%s189]
            %323 = vst [vmem:[%s197 + $0xf8] sm:%s189] %v322
            %v324 = vld [vmem:[%s196 + $0xfc] sm:%s189]
            %325 = vst [vmem:[%s197 + $0xfc] sm:%s189] %v324
          $region53: #{_lstm_forward_impl.1} parent=40 // loop_footer
            %s195 = sadd.s32 1, %s191
          $region54: #{_lstm_forward_impl.1} parent=40 // loop_footer_branch
            %190 = sbr.rel target = $region50
          $region55: #{_lstm_forward_impl.1} parent=40 // loop_exit
            _
        $region41: #{_lstm_forward_impl.1} parent=25 // pred_fallthru
          _
      $region26: #{_lstm_forward_impl.1} parent=22 // pred_fallthru
        _
      // Predicated region
      $region27: #{_lstm_forward_impl.1} parent=22 // pred_check
        %p31 = pneg %p27
      $region28: #{_lstm_forward_impl.1} parent=22 // pred_check_branch
        %33 = sbr.rel (%p31) target = $region30
      $region29: #{_lstm_forward_impl.1} parent=22 // pred_region
        %s34 = sshllo.u32 0, 4
        loop: start=0, step=1, limit=1
        $region31: #{_lstm_forward_impl.1} parent=29 // loop_pre_header
          _
        $region32: #{_lstm_forward_impl.1} parent=29 // loop_header
          %s36 = sphi 0, %s40
          %p37 = scmp.ge.s32.totalorder %s36, 1
          %s41 = sphi %s4, %s4
          %s42 = sphi [#allocation2], [#allocation2]
        $region33: #{_lstm_forward_impl.1} parent=29 // loop_header_branch
          %39 = sbr.rel (%p37) target = $region37
        $region34: #{_lstm_forward_impl.1} parent=29 // loop_body
          %v43 = vld [vmem:[%s41] sm:%s34]
          %44 = vst [vmem:[%s42] sm:%s34] %v43
          %v45 = vld [vmem:[%s41 + $0x10] sm:%s34]
          %46 = vst [vmem:[%s42 + $0x4] sm:%s34] %v45
          %v47 = vld [vmem:[%s41 + $0x4] sm:%s34]
          %48 = vst [vmem:[%s42 + $0x8] sm:%s34] %v47
          %v49 = vld [vmem:[%s41 + $0x14] sm:%s34]
          %50 = vst [vmem:[%s42 + $0xc] sm:%s34] %v49
          %v51 = vld [vmem:[%s41 + $0x8] sm:%s34]
          %52 = vst [vmem:[%s42 + $0x10] sm:%s34] %v51
          %v53 = vld [vmem:[%s41 + $0x18] sm:%s34]
          %54 = vst [vmem:[%s42 + $0x14] sm:%s34] %v53
          %v55 = vld [vmem:[%s41 + $0xc] sm:%s34]
          %56 = vst [vmem:[%s42 + $0x18] sm:%s34] %v55
          %v57 = vld [vmem:[%s41 + $0x1c] sm:%s34]
          %58 = vst [vmem:[%s42 + $0x1c] sm:%s34] %v57
          %v59 = vld [vmem:[%s41 + $0x20] sm:%s34]
          %60 = vst [vmem:[%s42 + $0x20] sm:%s34] %v59
          %v61 = vld [vmem:[%s41 + $0x30] sm:%s34]
          %62 = vst [vmem:[%s42 + $0x24] sm:%s34] %v61
          %v63 = vld [vmem:[%s41 + $0x24] sm:%s34]
          %64 = vst [vmem:[%s42 + $0x28] sm:%s34] %v63
          %v65 = vld [vmem:[%s41 + $0x34] sm:%s34]
          %66 = vst [vmem:[%s42 + $0x2c] sm:%s34] %v65
          %v67 = vld [vmem:[%s41 + $0x28] sm:%s34]
          %68 = vst [vmem:[%s42 + $0x30] sm:%s34] %v67
          %v69 = vld [vmem:[%s41 + $0x38] sm:%s34]
          %70 = vst [vmem:[%s42 + $0x34] sm:%s34] %v69
          %v71 = vld [vmem:[%s41 + $0x2c] sm:%s34]
          %72 = vst [vmem:[%s42 + $0x38] sm:%s34] %v71
          %v73 = vld [vmem:[%s41 + $0x3c] sm:%s34]
          %74 = vst [vmem:[%s42 + $0x3c] sm:%s34] %v73
          %v75 = vld [vmem:[%s41 + $0x40] sm:%s34]
          %76 = vst [vmem:[%s42 + $0x40] sm:%s34] %v75
          %v77 = vld [vmem:[%s41 + $0x50] sm:%s34]
          %78 = vst [vmem:[%s42 + $0x44] sm:%s34] %v77
          %v79 = vld [vmem:[%s41 + $0x44] sm:%s34]
          %80 = vst [vmem:[%s42 + $0x48] sm:%s34] %v79
          %v81 = vld [vmem:[%s41 + $0x54] sm:%s34]
          %82 = vst [vmem:[%s42 + $0x4c] sm:%s34] %v81
          %v83 = vld [vmem:[%s41 + $0x48] sm:%s34]
          %84 = vst [vmem:[%s42 + $0x50] sm:%s34] %v83
          %v85 = vld [vmem:[%s41 + $0x58] sm:%s34]
          %86 = vst [vmem:[%s42 + $0x54] sm:%s34] %v85
          %v87 = vld [vmem:[%s41 + $0x4c] sm:%s34]
          %88 = vst [vmem:[%s42 + $0x58] sm:%s34] %v87
          %v89 = vld [vmem:[%s41 + $0x5c] sm:%s34]
          %90 = vst [vmem:[%s42 + $0x5c] sm:%s34] %v89
          %v91 = vld [vmem:[%s41 + $0x60] sm:%s34]
          %92 = vst [vmem:[%s42 + $0x60] sm:%s34] %v91
          %v93 = vld [vmem:[%s41 + $0x70] sm:%s34]
          %94 = vst [vmem:[%s42 + $0x64] sm:%s34] %v93
          %v95 = vld [vmem:[%s41 + $0x64] sm:%s34]
          %96 = vst [vmem:[%s42 + $0x68] sm:%s34] %v95
          %v97 = vld [vmem:[%s41 + $0x74] sm:%s34]
          %98 = vst [vmem:[%s42 + $0x6c] sm:%s34] %v97
          %v99 = vld [vmem:[%s41 + $0x68] sm:%s34]
          %100 = vst [vmem:[%s42 + $0x70] sm:%s34] %v99
          %v101 = vld [vmem:[%s41 + $0x78] sm:%s34]
          %102 = vst [vmem:[%s42 + $0x74] sm:%s34] %v101
          %v103 = vld [vmem:[%s41 + $0x6c] sm:%s34]
          %104 = vst [vmem:[%s42 + $0x78] sm:%s34] %v103
          %v105 = vld [vmem:[%s41 + $0x7c] sm:%s34]
          %106 = vst [vmem:[%s42 + $0x7c] sm:%s34] %v105
          %v107 = vld [vmem:[%s41 + $0x80] sm:%s34]
          %108 = vst [vmem:[%s42 + $0x80] sm:%s34] %v107
          %v109 = vld [vmem:[%s41 + $0x90] sm:%s34]
          %110 = vst [vmem:[%s42 + $0x84] sm:%s34] %v109
          %v111 = vld [vmem:[%s41 + $0x84] sm:%s34]
          %112 = vst [vmem:[%s42 + $0x88] sm:%s34] %v111
          %v113 = vld [vmem:[%s41 + $0x94] sm:%s34]
          %114 = vst [vmem:[%s42 + $0x8c] sm:%s34] %v113
          %v115 = vld [vmem:[%s41 + $0x88] sm:%s34]
          %116 = vst [vmem:[%s42 + $0x90] sm:%s34] %v115
          %v117 = vld [vmem:[%s41 + $0x98] sm:%s34]
          %118 = vst [vmem:[%s42 + $0x94] sm:%s34] %v117
          %v119 = vld [vmem:[%s41 + $0x8c] sm:%s34]
          %120 = vst [vmem:[%s42 + $0x98] sm:%s34] %v119
          %v121 = vld [vmem:[%s41 + $0x9c] sm:%s34]
          %122 = vst [vmem:[%s42 + $0x9c] sm:%s34] %v121
          %v123 = vld [vmem:[%s41 + $0xa0] sm:%s34]
          %124 = vst [vmem:[%s42 + $0xa0] sm:%s34] %v123
          %v125 = vld [vmem:[%s41 + $0xb0] sm:%s34]
          %126 = vst [vmem:[%s42 + $0xa4] sm:%s34] %v125
          %v127 = vld [vmem:[%s41 + $0xa4] sm:%s34]
          %128 = vst [vmem:[%s42 + $0xa8] sm:%s34] %v127
          %v129 = vld [vmem:[%s41 + $0xb4] sm:%s34]
          %130 = vst [vmem:[%s42 + $0xac] sm:%s34] %v129
          %v131 = vld [vmem:[%s41 + $0xa8] sm:%s34]
          %132 = vst [vmem:[%s42 + $0xb0] sm:%s34] %v131
          %v133 = vld [vmem:[%s41 + $0xb8] sm:%s34]
          %134 = vst [vmem:[%s42 + $0xb4] sm:%s34] %v133
          %v135 = vld [vmem:[%s41 + $0xac] sm:%s34]
          %136 = vst [vmem:[%s42 + $0xb8] sm:%s34] %v135
          %v137 = vld [vmem:[%s41 + $0xbc] sm:%s34]
          %138 = vst [vmem:[%s42 + $0xbc] sm:%s34] %v137
          %v139 = vld [vmem:[%s41 + $0xc0] sm:%s34]
          %140 = vst [vmem:[%s42 + $0xc0] sm:%s34] %v139
          %v141 = vld [vmem:[%s41 + $0xd0] sm:%s34]
          %142 = vst [vmem:[%s42 + $0xc4] sm:%s34] %v141
          %v143 = vld [vmem:[%s41 + $0xc4] sm:%s34]
          %144 = vst [vmem:[%s42 + $0xc8] sm:%s34] %v143
          %v145 = vld [vmem:[%s41 + $0xd4] sm:%s34]
          %146 = vst [vmem:[%s42 + $0xcc] sm:%s34] %v145
          %v147 = vld [vmem:[%s41 + $0xc8] sm:%s34]
          %148 = vst [vmem:[%s42 + $0xd0] sm:%s34] %v147
          %v149 = vld [vmem:[%s41 + $0xd8] sm:%s34]
          %150 = vst [vmem:[%s42 + $0xd4] sm:%s34] %v149
          %v151 = vld [vmem:[%s41 + $0xcc] sm:%s34]
          %152 = vst [vmem:[%s42 + $0xd8] sm:%s34] %v151
          %v153 = vld [vmem:[%s41 + $0xdc] sm:%s34]
          %154 = vst [vmem:[%s42 + $0xdc] sm:%s34] %v153
          %v155 = vld [vmem:[%s41 + $0xe0] sm:%s34]
          %156 = vst [vmem:[%s42 + $0xe0] sm:%s34] %v155
          %v157 = vld [vmem:[%s41 + $0xf0] sm:%s34]
          %158 = vst [vmem:[%s42 + $0xe4] sm:%s34] %v157
          %v159 = vld [vmem:[%s41 + $0xe4] sm:%s34]
          %160 = vst [vmem:[%s42 + $0xe8] sm:%s34] %v159
          %v161 = vld [vmem:[%s41 + $0xf4] sm:%s34]
          %162 = vst [vmem:[%s42 + $0xec] sm:%s34] %v161
          %v163 = vld [vmem:[%s41 + $0xe8] sm:%s34]
          %164 = vst [vmem:[%s42 + $0xf0] sm:%s34] %v163
          %v165 = vld [vmem:[%s41 + $0xf8] sm:%s34]
          %166 = vst [vmem:[%s42 + $0xf4] sm:%s34] %v165
          %v167 = vld [vmem:[%s41 + $0xec] sm:%s34]
          %168 = vst [vmem:[%s42 + $0xf8] sm:%s34] %v167
          %v169 = vld [vmem:[%s41 + $0xfc] sm:%s34]
          %170 = vst [vmem:[%s42 + $0xfc] sm:%s34] %v169
        $region35: #{_lstm_forward_impl.1} parent=29 // loop_footer
          %s40 = sadd.s32 1, %s36
        $region36: #{_lstm_forward_impl.1} parent=29 // loop_footer_branch
          %35 = sbr.rel target = $region32
        $region37: #{_lstm_forward_impl.1} parent=29 // loop_exit
          _
      $region30: #{_lstm_forward_impl.1} parent=22 // pred_fallthru
        _
      // Predicated region
      $region56: #{_lstm_forward_impl.1} parent=22 // pred_check
        _
      $region57: #{_lstm_forward_impl.1} parent=22 // pred_check_branch
        %328 = sbr.rel (0) target = $region59
      $region58: #{_lstm_forward_impl.1} parent=22 // pred_region
        %329 = vsyncadd [#allocation5], 4096
      $region59: #{_lstm_forward_impl.1} parent=22 // pred_fallthru
        _
      %s330 = smul.u32 4, 16
      %s331 = smul.u32 %s330, 4
      %s332 = sshll.u32 %s331, 4
      %333 = dma.done [#allocation5], %s332
    %v334 = vld [vmem:[%s2] sm:$0xff]
    %v335 = vld [vmem:[%s2 + $0x8] sm:$0xff]
    %336 = vst [vmem:[#allocation3] sm:$0xff] %v334
    %337 = vst [vmem:[#allocation3 + $0x8] sm:$0xff] %v335
    %v338 = vld [vmem:[%s3] sm:$0xff]
    %v339 = vld [vmem:[%s3 + $0x8] sm:$0xff]
    %340 = vst [vmem:[#allocation4] sm:$0xff] %v338
    %341 = vst [vmem:[#allocation4 + $0x8] sm:$0xff] %v339
  $region21: #{_lstm_forward_impl.1} parent=0 // pred_fallthru
    _
  %v342 = vld [vmem:[#allocation2] sm:$0xff]
  %v343 = vld [vmem:[#allocation2 + $0x8] sm:$0xff]
  %v344 = vld [vmem:[#allocation2 + $0x10] sm:$0xff]
  %v345 = vld [vmem:[#allocation2 + $0x18] sm:$0xff]
  %v346 = vld [vmem:[#allocation2 + $0x20] sm:$0xff]
  %v347 = vld [vmem:[#allocation2 + $0x28] sm:$0xff]
  %v348 = vld [vmem:[#allocation2 + $0x30] sm:$0xff]
  %v349 = vld [vmem:[#allocation2 + $0x38] sm:$0xff]
  %v350 = vld [vmem:[#allocation2 + $0x40] sm:$0xff]
  %v351 = vld [vmem:[#allocation2 + $0x48] sm:$0xff]
  %v352 = vld [vmem:[#allocation2 + $0x50] sm:$0xff]
  %v353 = vld [vmem:[#allocation2 + $0x58] sm:$0xff]
  %v354 = vld [vmem:[#allocation2 + $0x60] sm:$0xff]
  %v355 = vld [vmem:[#allocation2 + $0x68] sm:$0xff]
  %v356 = vld [vmem:[#allocation2 + $0x70] sm:$0xff]
  %v357 = vld [vmem:[#allocation2 + $0x78] sm:$0xff]
  %v358 = vld [vmem:[#allocation2 + $0x80] sm:$0xff]
  %v359 = vld [vmem:[#allocation2 + $0x88] sm:$0xff]
  %v360 = vld [vmem:[#allocation2 + $0x90] sm:$0xff]
  %v361 = vld [vmem:[#allocation2 + $0x98] sm:$0xff]
  %v362 = vld [vmem:[#allocation2 + $0xa0] sm:$0xff]
  %v363 = vld [vmem:[#allocation2 + $0xa8] sm:$0xff]
  %v364 = vld [vmem:[#allocation2 + $0xb0] sm:$0xff]
  %v365 = vld [vmem:[#allocation2 + $0xb8] sm:$0xff]
  %v366 = vld [vmem:[#allocation2 + $0xc0] sm:$0xff]
  %v367 = vld [vmem:[#allocation2 + $0xc8] sm:$0xff]
  %v368 = vld [vmem:[#allocation2 + $0xd0] sm:$0xff]
  %v369 = vld [vmem:[#allocation2 + $0xd8] sm:$0xff]
  %v370 = vld [vmem:[#allocation2 + $0xe0] sm:$0xff]
  %v371 = vld [vmem:[#allocation2 + $0xe8] sm:$0xff]
  %v372 = vld [vmem:[#allocation2 + $0xf0] sm:$0xff]
  %v373 = vld [vmem:[#allocation2 + $0xf8] sm:$0xff]
  %v374 = vld [vmem:[%s1] sm:$0xf]
  %v376 = vlaneseq
  %v377 = vshrl.u32 %v376, 7
  %v378 = vsub.s32 0, %v377
  %v379 = vrot.slane %v374, %v378
  %v380 = vlaneseq
  %v381 = vshrl.u32 %v380, 7
  %v382 = vsub.s32 1, %v381
  %v383 = vrot.slane %v374, %v382
  %v384 = vlaneseq
  %v385 = vshrl.u32 %v384, 7
  %v386 = vsub.s32 2, %v385
  %v387 = vrot.slane %v374, %v386
  %v388 = vlaneseq
  %v389 = vshrl.u32 %v388, 7
  %v390 = vsub.s32 3, %v389
  %v391 = vrot.slane %v374, %v390
  %v396 = vld [vmem:[#allocation3] sm:$0xff]
  %v397 = vld [vmem:[#allocation3 + $0x8] sm:$0xff]
  %v398 = vld [vmem:[#allocation4] sm:$0xff]
  %v399 = vld [vmem:[#allocation4 + $0x8] sm:$0xff]
  %v400 = vld [vmem:[%s0] sm:$0xff]
  %v401 = vld [vmem:[%s0 + $0x8] sm:$0xff]
  %v402 = vld [vmem:[%s0 + $0x10] sm:$0xff]
  %v403 = vld [vmem:[%s0 + $0x18] sm:$0xff]
  %v404 = vunpack.c.l.bf16 %v400
  %v405 = vunpack.c.h.bf16 %v400
  %v406 = vunpack.c.l.bf16 %v401
  %v407 = vunpack.c.h.bf16 %v401
  %v408 = vunpack.c.l.bf16 %v402
  %v409 = vunpack.c.h.bf16 %v402
  %v410 = vunpack.c.l.bf16 %v403
  %v411 = vunpack.c.h.bf16 %v403
  %v412 = vadd.f32 %v404, %v379
  %v413 = vadd.f32 %v405, %v383
  %v414 = vadd.f32 %v406, %v387
  %v415 = vadd.f32 %v407, %v391
  %v416 = vadd.f32 %v408, %v379
  %v417 = vadd.f32 %v409, %v383
  %v418 = vadd.f32 %v410, %v387
  %v419 = vadd.f32 %v411, %v391
  %v420 = vpack.c.bf16 %v397, %v396
  %421 = vmatprep.subr.bf16.mxu0 %v343
  %422 = vmatpush1.bf16.msra.mxu0 %v342
  %423 = vmatprep.subr.bf16.mxu0 %v347
  %424 = vmatpush1.bf16.msra.mxu0 %v346
  %425 = vmatprep.subr.bf16.mxu0 %v351
  %426 = vmatpush1.bf16.msra.mxu0 %v350
  %427 = vmatprep.subr.bf16.mxu0 %v355
  %428 = vmatpush1.bf16.msra.mxu0 %v354
  %429 = vmatprep.subr.bf16.mxu0 %v359
  %430 = vmatpush1.bf16.msra.mxu0 %v358
  %431 = vmatprep.subr.bf16.mxu0 %v363
  %432 = vmatpush1.bf16.msra.mxu0 %v362
  %433 = vmatprep.subr.bf16.mxu0 %v367
  %434 = vmatpush1.bf16.msra.mxu0 %v366
  %435 = vmatprep.subr.bf16.mxu0 %v371
  %436 = vmatpush1.bf16.msra.mxu0 %v370
  %437 = vmatprep.subr.bf16.mxu0 0
  %438 = vmatpush1.bf16.msra.mxu0 0
  %439 = vmatprep.subr.bf16.mxu0 0
  %440 = vmatpush1.bf16.msra.mxu0 0
  %441 = vmatprep.subr.bf16.mxu0 0
  %442 = vmatpush1.bf16.msra.mxu0 0
  %443 = vmatprep.subr.bf16.mxu0 0
  %444 = vmatpush1.bf16.msra.mxu0 0
  %445 = vmatprep.subr.bf16.mxu0 0
  %446 = vmatpush1.bf16.msra.mxu0 0
  %447 = vmatprep.subr.bf16.mxu0 0
  %448 = vmatpush1.bf16.msra.mxu0 0
  %449 = vmatprep.subr.bf16.mxu0 0
  %450 = vmatpush1.bf16.msra.mxu0 0
  %451 = vmatprep.subr.bf16.mxu0 0
  %452 = vmatpush1.bf16.msra.mxu0 0
  %453 = vmatprep.mubr.bf16.mxu0 0
  %454 = vmatmul.mubr.bf16.gmra.mrb[0].mxu0 %v420
  %v455 = vpop.f32.mrb[0].mxu0
  %v456 = vadd.f32 0.0, %v455
  %v457 = vpop.f32.mrb[0].mxu0
  %v458 = vadd.f32 0.0, %v457
  %v459 = vpop.f32.mrb[0].mxu0
  %v460 = vadd.f32 0.0, %v459
  %v461 = vpop.f32.mrb[0].mxu0
  %v462 = vadd.f32 0.0, %v461
  %463 = vdwg.mxu0
  %464 = vmatprep.subr.bf16.mxu0 %v345
  %465 = vmatpush1.bf16.msra.mxu0 %v344
  %466 = vmatprep.subr.bf16.mxu0 %v349
  %467 = vmatpush1.bf16.msra.mxu0 %v348
  %468 = vmatprep.subr.bf16.mxu0 %v353
  %469 = vmatpush1.bf16.msra.mxu0 %v352
  %470 = vmatprep.subr.bf16.mxu0 %v357
  %471 = vmatpush1.bf16.msra.mxu0 %v356
  %472 = vmatprep.subr.bf16.mxu0 %v361
  %473 = vmatpush1.bf16.msra.mxu0 %v360
  %474 = vmatprep.subr.bf16.mxu0 %v365
  %475 = vmatpush1.bf16.msra.mxu0 %v364
  %476 = vmatprep.subr.bf16.mxu0 %v369
  %477 = vmatpush1.bf16.msra.mxu0 %v368
  %478 = vmatprep.subr.bf16.mxu0 %v373
  %479 = vmatpush1.bf16.msra.mxu0 %v372
  %480 = vmatprep.subr.bf16.mxu0 0
  %481 = vmatpush1.bf16.msra.mxu0 0
  %482 = vmatprep.subr.bf16.mxu0 0
  %483 = vmatpush1.bf16.msra.mxu0 0
  %484 = vmatprep.subr.bf16.mxu0 0
  %485 = vmatpush1.bf16.msra.mxu0 0
  %486 = vmatprep.subr.bf16.mxu0 0
  %487 = vmatpush1.bf16.msra.mxu0 0
  %488 = vmatprep.subr.bf16.mxu0 0
  %489 = vmatpush1.bf16.msra.mxu0 0
  %490 = vmatprep.subr.bf16.mxu0 0
  %491 = vmatpush1.bf16.msra.mxu0 0
  %492 = vmatprep.subr.bf16.mxu0 0
  %493 = vmatpush1.bf16.msra.mxu0 0
  %494 = vmatprep.subr.bf16.mxu0 0
  %495 = vmatpush1.bf16.msra.mxu0 0
  %496 = vmatprep.mubr.bf16.mxu0 0
  %497 = vmatmul.mubr.bf16.gmra.mrb[0].mxu0 %v420
  %v498 = vpop.f32.mrb[0].mxu0
  %v499 = vadd.f32 0.0, %v498
  %v500 = vpop.f32.mrb[0].mxu0
  %v501 = vadd.f32 0.0, %v500
  %v502 = vpop.f32.mrb[0].mxu0
  %v503 = vadd.f32 0.0, %v502
  %v504 = vpop.f32.mrb[0].mxu0
  %v505 = vadd.f32 0.0, %v504
  %506 = vdwg.mxu0
  %v507 = vadd.f32 %v412, %v456
  %v508 = vadd.f32 %v413, %v458
  %v509 = vadd.f32 %v414, %v499
  %v510 = vadd.f32 %v415, %v501
  %v511 = vadd.f32 %v416, %v460
  %v512 = vadd.f32 %v417, %v462
  %v513 = vadd.f32 %v418, %v503
  %v514 = vadd.f32 %v419, %v505
  %v515 = vmul.f32 %v507, 0.5
  %v516 = vmul.f32 %v511, 0.5
  %v517 = vtanh.pop %v515
  %v518 = vtanh.pop %v516
  %v519 = vmul.f32 %v517, 0.5
  %v520 = vmul.f32 %v518, 0.5
  %v521 = vadd.f32 %v519, 0.5
  %v522 = vadd.f32 %v520, 0.5
  %v523 = vmul.f32 %v508, 0.5
  %v524 = vmul.f32 %v512, 0.5
  %v525 = vtanh.pop %v523
  %v526 = vtanh.pop %v524
  %v527 = vmul.f32 %v525, 0.5
  %v528 = vmul.f32 %v526, 0.5
  %v529 = vadd.f32 %v527, 0.5
  %v530 = vadd.f32 %v528, 0.5
  %v531 = vtanh.pop %v509
  %v532 = vtanh.pop %v513
  %v533 = vmul.f32 %v510, 0.5
  %v534 = vmul.f32 %v514, 0.5
  %v535 = vtanh.pop %v533
  %v536 = vtanh.pop %v534
  %v537 = vmul.f32 %v535, 0.5
  %v538 = vmul.f32 %v536, 0.5
  %v539 = vadd.f32 %v537, 0.5
  %v540 = vadd.f32 %v538, 0.5
  %v541 = vmul.f32 %v529, %v398
  %v542 = vmul.f32 %v530, %v399
  %v543 = vmul.f32 %v521, %v531
  %v544 = vmul.f32 %v522, %v532
  %v545 = vadd.f32 %v541, %v543
  %v546 = vadd.f32 %v542, %v544
  %v547 = vtanh.pop %v545
  %v548 = vtanh.pop %v546
  %v549 = vmul.f32 %v539, %v547
  %v550 = vmul.f32 %v540, %v548
  %551 = vst [vmem:[%s5] sm:$0xff] %v549
  %552 = vst [vmem:[%s5 + $0x8] sm:$0xff] %v550
  %s553 = scalar_lea.vmem %s0, 32
  %v554 = vld [vmem:[%s553] sm:$0xff]
  %v555 = vld [vmem:[%s553 + $0x8] sm:$0xff]
  %v556 = vld [vmem:[%s553 + $0x10] sm:$0xff]
  %v557 = vld [vmem:[%s553 + $0x18] sm:$0xff]
  %v558 = vunpack.c.l.bf16 %v554
  %v559 = vunpack.c.h.bf16 %v554
  %v560 = vunpack.c.l.bf16 %v555
  %v561 = vunpack.c.h.bf16 %v555
  %v562 = vunpack.c.l.bf16 %v556
  %v563 = vunpack.c.h.bf16 %v556
  %v564 = vunpack.c.l.bf16 %v557
  %v565 = vunpack.c.h.bf16 %v557
  %v566 = vadd.f32 %v558, %v379
  %v567 = vadd.f32 %v559, %v383
  %v568 = vadd.f32 %v560, %v387
  %v569 = vadd.f32 %v561, %v391
  %v570 = vadd.f32 %v562, %v379
  %v571 = vadd.f32 %v563, %v383
  %v572 = vadd.f32 %v564, %v387
  %v573 = vadd.f32 %v565, %v391
  %v574 = vpack.c.bf16 %v550, %v549
  %575 = vmatprep.subr.bf16.mxu0 %v343
  %576 = vmatpush1.bf16.msra.mxu0 %v342
  %577 = vmatprep.subr.bf16.mxu0 %v347
  %578 = vmatpush1.bf16.msra.mxu0 %v346
  %579 = vmatprep.subr.bf16.mxu0 %v351
  %580 = vmatpush1.bf16.msra.mxu0 %v350
  %581 = vmatprep.subr.bf16.mxu0 %v355
  %582 = vmatpush1.bf16.msra.mxu0 %v354
  %583 = vmatprep.subr.bf16.mxu0 %v359
  %584 = vmatpush1.bf16.msra.mxu0 %v358
  %585 = vmatprep.subr.bf16.mxu0 %v363
  %586 = vmatpush1.bf16.msra.mxu0 %v362
  %587 = vmatprep.subr.bf16.mxu0 %v367
  %588 = vmatpush1.bf16.msra.mxu0 %v366
  %589 = vmatprep.subr.bf16.mxu0 %v371
  %590 = vmatpush1.bf16.msra.mxu0 %v370
  %591 = vmatprep.subr.bf16.mxu0 0
  %592 = vmatpush1.bf16.msra.mxu0 0
  %593 = vmatprep.subr.bf16.mxu0 0
  %594 = vmatpush1.bf16.msra.mxu0 0
  %595 = vmatprep.subr.bf16.mxu0 0
  %596 = vmatpush1.bf16.msra.mxu0 0
  %597 = vmatprep.subr.bf16.mxu0 0
  %598 = vmatpush1.bf16.msra.mxu0 0
  %599 = vmatprep.subr.bf16.mxu0 0
  %600 = vmatpush1.bf16.msra.mxu0 0
  %601 = vmatprep.subr.bf16.mxu0 0
  %602 = vmatpush1.bf16.msra.mxu0 0
  %603 = vmatprep.subr.bf16.mxu0 0
  %604 = vmatpush1.bf16.msra.mxu0 0
  %605 = vmatprep.subr.bf16.mxu0 0
  %606 = vmatpush1.bf16.msra.mxu0 0
  %607 = vmatprep.mubr.bf16.mxu0 0
  %608 = vmatmul.mubr.bf16.gmra.mrb[0].mxu0 %v574
  %v609 = vpop.f32.mrb[0].mxu0
  %v610 = vadd.f32 0.0, %v609
  %v611 = vpop.f32.mrb[0].mxu0
  %v612 = vadd.f32 0.0, %v611
  %v613 = vpop.f32.mrb[0].mxu0
  %v614 = vadd.f32 0.0, %v613
  %v615 = vpop.f32.mrb[0].mxu0
  %v616 = vadd.f32 0.0, %v615
  %617 = vdwg.mxu0
  %618 = vmatprep.subr.bf16.mxu0 %v345
  %619 = vmatpush1.bf16.msra.mxu0 %v344
  %620 = vmatprep.subr.bf16.mxu0 %v349
  %621 = vmatpush1.bf16.msra.mxu0 %v348
  %622 = vmatprep.subr.bf16.mxu0 %v353
  %623 = vmatpush1.bf16.msra.mxu0 %v352
  %624 = vmatprep.subr.bf16.mxu0 %v357
  %625 = vmatpush1.bf16.msra.mxu0 %v356
  %626 = vmatprep.subr.bf16.mxu0 %v361
  %627 = vmatpush1.bf16.msra.mxu0 %v360
  %628 = vmatprep.subr.bf16.mxu0 %v365
  %629 = vmatpush1.bf16.msra.mxu0 %v364
  %630 = vmatprep.subr.bf16.mxu0 %v369
  %631 = vmatpush1.bf16.msra.mxu0 %v368
  %632 = vmatprep.subr.bf16.mxu0 %v373
  %633 = vmatpush1.bf16.msra.mxu0 %v372
  %634 = vmatprep.subr.bf16.mxu0 0
  %635 = vmatpush1.bf16.msra.mxu0 0
  %636 = vmatprep.subr.bf16.mxu0 0
  %637 = vmatpush1.bf16.msra.mxu0 0
  %638 = vmatprep.subr.bf16.mxu0 0
  %639 = vmatpush1.bf16.msra.mxu0 0
  %640 = vmatprep.subr.bf16.mxu0 0
  %641 = vmatpush1.bf16.msra.mxu0 0
  %642 = vmatprep.subr.bf16.mxu0 0
  %643 = vmatpush1.bf16.msra.mxu0 0
  %644 = vmatprep.subr.bf16.mxu0 0
  %645 = vmatpush1.bf16.msra.mxu0 0
  %646 = vmatprep.subr.bf16.mxu0 0
  %647 = vmatpush1.bf16.msra.mxu0 0
  %648 = vmatprep.subr.bf16.mxu0 0
  %649 = vmatpush1.bf16.msra.mxu0 0
  %650 = vmatprep.mubr.bf16.mxu0 0
  %651 = vmatmul.mubr.bf16.gmra.mrb[0].mxu0 %v574
  %v652 = vpop.f32.mrb[0].mxu0
  %v653 = vadd.f32 0.0, %v652
  %v654 = vpop.f32.mrb[0].mxu0
  %v655 = vadd.f32 0.0, %v654
  %v656 = vpop.f32.mrb[0].mxu0
  %v657 = vadd.f32 0.0, %v656
  %v658 = vpop.f32.mrb[0].mxu0
  %v659 = vadd.f32 0.0, %v658
  %660 = vdwg.mxu0
  %v661 = vadd.f32 %v566, %v610
  %v662 = vadd.f32 %v567, %v612
  %v663 = vadd.f32 %v568, %v653
  %v664 = vadd.f32 %v569, %v655
  %v665 = vadd.f32 %v570, %v614
  %v666 = vadd.f32 %v571, %v616
  %v667 = vadd.f32 %v572, %v657
  %v668 = vadd.f32 %v573, %v659
  %v669 = vmul.f32 %v661, 0.5
  %v670 = vmul.f32 %v665, 0.5
  %v671 = vtanh.pop %v669
  %v672 = vtanh.pop %v670
  %v673 = vmul.f32 %v671, 0.5
  %v674 = vmul.f32 %v672, 0.5
  %v675 = vadd.f32 %v673, 0.5
  %v676 = vadd.f32 %v674, 0.5
  %v677 = vmul.f32 %v662, 0.5
  %v678 = vmul.f32 %v666, 0.5
  %v679 = vtanh.pop %v677
  %v680 = vtanh.pop %v678
  %v681 = vmul.f32 %v679, 0.5
  %v682 = vmul.f32 %v680, 0.5
  %v683 = vadd.f32 %v681, 0.5
  %v684 = vadd.f32 %v682, 0.5
  %v685 = vtanh.pop %v663
  %v686 = vtanh.pop %v667
  %v687 = vmul.f32 %v664, 0.5
  %v688 = vmul.f32 %v668, 0.5
  %v689 = vtanh.pop %v687
  %v690 = vtanh.pop %v688
  %v691 = vmul.f32 %v689, 0.5
  %v692 = vmul.f32 %v690, 0.5
  %v693 = vadd.f32 %v691, 0.5
  %v694 = vadd.f32 %v692, 0.5
  %v695 = vmul.f32 %v683, %v545
  %v696 = vmul.f32 %v684, %v546
  %v697 = vmul.f32 %v675, %v685
  %v698 = vmul.f32 %v676, %v686
  %v699 = vadd.f32 %v695, %v697
  %v700 = vadd.f32 %v696, %v698
  %v701 = vtanh.pop %v699
  %v702 = vtanh.pop %v700
  %v703 = vmul.f32 %v693, %v701
  %v704 = vmul.f32 %v694, %v702
  %s705 = scalar_lea.vmem %s5, 16
  %706 = vst [vmem:[%s705] sm:$0xff] %v703
  %707 = vst [vmem:[%s705 + $0x8] sm:$0xff] %v704
  %s708 = scalar_lea.vmem %s0, 64
  %v709 = vld [vmem:[%s708] sm:$0xff]
  %v710 = vld [vmem:[%s708 + $0x8] sm:$0xff]
  %v711 = vld [vmem:[%s708 + $0x10] sm:$0xff]
  %v712 = vld [vmem:[%s708 + $0x18] sm:$0xff]
  %v713 = vunpack.c.l.bf16 %v709
  %v714 = vunpack.c.h.bf16 %v709
  %v715 = vunpack.c.l.bf16 %v710
  %v716 = vunpack.c.h.bf16 %v710
  %v717 = vunpack.c.l.bf16 %v711
  %v718 = vunpack.c.h.bf16 %v711
  %v719 = vunpack.c.l.bf16 %v712
  %v720 = vunpack.c.h.bf16 %v712
  %v721 = vadd.f32 %v713, %v379
  %v722 = vadd.f32 %v714, %v383
  %v723 = vadd.f32 %v715, %v387
  %v724 = vadd.f32 %v716, %v391
  %v725 = vadd.f32 %v717, %v379
  %v726 = vadd.f32 %v718, %v383
  %v727 = vadd.f32 %v719, %v387
  %v728 = vadd.f32 %v720, %v391
  %v729 = vpack.c.bf16 %v704, %v703
  %730 = vmatprep.subr.bf16.mxu0 %v343
  %731 = vmatpush1.bf16.msra.mxu0 %v342
  %732 = vmatprep.subr.bf16.mxu0 %v347
  %733 = vmatpush1.bf16.msra.mxu0 %v346
  %734 = vmatprep.subr.bf16.mxu0 %v351
  %735 = vmatpush1.bf16.msra.mxu0 %v350
  %736 = vmatprep.subr.bf16.mxu0 %v355
  %737 = vmatpush1.bf16.msra.mxu0 %v354
  %738 = vmatprep.subr.bf16.mxu0 %v359
  %739 = vmatpush1.bf16.msra.mxu0 %v358
  %740 = vmatprep.subr.bf16.mxu0 %v363
  %741 = vmatpush1.bf16.msra.mxu0 %v362
  %742 = vmatprep.subr.bf16.mxu0 %v367
  %743 = vmatpush1.bf16.msra.mxu0 %v366
  %744 = vmatprep.subr.bf16.mxu0 %v371
  %745 = vmatpush1.bf16.msra.mxu0 %v370
  %746 = vmatprep.subr.bf16.mxu0 0
  %747 = vmatpush1.bf16.msra.mxu0 0
  %748 = vmatprep.subr.bf16.mxu0 0
  %749 = vmatpush1.bf16.msra.mxu0 0
  %750 = vmatprep.subr.bf16.mxu0 0
  %751 = vmatpush1.bf16.msra.mxu0 0
  %752 = vmatprep.subr.bf16.mxu0 0
  %753 = vmatpush1.bf16.msra.mxu0 0
  %754 = vmatprep.subr.bf16.mxu0 0
  %755 = vmatpush1.bf16.msra.mxu0 0
  %756 = vmatprep.subr.bf16.mxu0 0
  %757 = vmatpush1.bf16.msra.mxu0 0
  %758 = vmatprep.subr.bf16.mxu0 0
  %759 = vmatpush1.bf16.msra.mxu0 0
  %760 = vmatprep.subr.bf16.mxu0 0
  %761 = vmatpush1.bf16.msra.mxu0 0
  %762 = vmatprep.mubr.bf16.mxu0 0
  %763 = vmatmul.mubr.bf16.gmra.mrb[0].mxu0 %v729
  %v764 = vpop.f32.mrb[0].mxu0
  %v765 = vadd.f32 0.0, %v764
  %v766 = vpop.f32.mrb[0].mxu0
  %v767 = vadd.f32 0.0, %v766
  %v768 = vpop.f32.mrb[0].mxu0
  %v769 = vadd.f32 0.0, %v768
  %v770 = vpop.f32.mrb[0].mxu0
  %v771 = vadd.f32 0.0, %v770
  %772 = vdwg.mxu0
  %773 = vmatprep.subr.bf16.mxu0 %v345
  %774 = vmatpush1.bf16.msra.mxu0 %v344
  %775 = vmatprep.subr.bf16.mxu0 %v349
  %776 = vmatpush1.bf16.msra.mxu0 %v348
  %777 = vmatprep.subr.bf16.mxu0 %v353
  %778 = vmatpush1.bf16.msra.mxu0 %v352
  %779 = vmatprep.subr.bf16.mxu0 %v357
  %780 = vmatpush1.bf16.msra.mxu0 %v356
  %781 = vmatprep.subr.bf16.mxu0 %v361
  %782 = vmatpush1.bf16.msra.mxu0 %v360
  %783 = vmatprep.subr.bf16.mxu0 %v365
  %784 = vmatpush1.bf16.msra.mxu0 %v364
  %785 = vmatprep.subr.bf16.mxu0 %v369
  %786 = vmatpush1.bf16.msra.mxu0 %v368
  %787 = vmatprep.subr.bf16.mxu0 %v373
  %788 = vmatpush1.bf16.msra.mxu0 %v372
  %789 = vmatprep.subr.bf16.mxu0 0
  %790 = vmatpush1.bf16.msra.mxu0 0
  %791 = vmatprep.subr.bf16.mxu0 0
  %792 = vmatpush1.bf16.msra.mxu0 0
  %793 = vmatprep.subr.bf16.mxu0 0
  %794 = vmatpush1.bf16.msra.mxu0 0
  %795 = vmatprep.subr.bf16.mxu0 0
  %796 = vmatpush1.bf16.msra.mxu0 0
  %797 = vmatprep.subr.bf16.mxu0 0
  %798 = vmatpush1.bf16.msra.mxu0 0
  %799 = vmatprep.subr.bf16.mxu0 0
  %800 = vmatpush1.bf16.msra.mxu0 0
  %801 = vmatprep.subr.bf16.mxu0 0
  %802 = vmatpush1.bf16.msra.mxu0 0
  %803 = vmatprep.subr.bf16.mxu0 0
  %804 = vmatpush1.bf16.msra.mxu0 0
  %805 = vmatprep.mubr.bf16.mxu0 0
  %806 = vmatmul.mubr.bf16.gmra.mrb[0].mxu0 %v729
  %v807 = vpop.f32.mrb[0].mxu0
  %v808 = vadd.f32 0.0, %v807
  %v809 = vpop.f32.mrb[0].mxu0
  %v810 = vadd.f32 0.0, %v809
  %v811 = vpop.f32.mrb[0].mxu0
  %v812 = vadd.f32 0.0, %v811
  %v813 = vpop.f32.mrb[0].mxu0
  %v814 = vadd.f32 0.0, %v813
  %815 = vdwg.mxu0
  %v816 = vadd.f32 %v721, %v765
  %v817 = vadd.f32 %v722, %v767
  %v818 = vadd.f32 %v723, %v808
  %v819 = vadd.f32 %v724, %v810
  %v820 = vadd.f32 %v725, %v769
  %v821 = vadd.f32 %v726, %v771
  %v822 = vadd.f32 %v727, %v812
  %v823 = vadd.f32 %v728, %v814
  %v824 = vmul.f32 %v816, 0.5
  %v825 = vmul.f32 %v820, 0.5
  %v826 = vtanh.pop %v824
  %v827 = vtanh.pop %v825
  %v828 = vmul.f32 %v826, 0.5
  %v829 = vmul.f32 %v827, 0.5
  %v830 = vadd.f32 %v828, 0.5
  %v831 = vadd.f32 %v829, 0.5
  %v832 = vmul.f32 %v817, 0.5
  %v833 = vmul.f32 %v821, 0.5
  %v834 = vtanh.pop %v832
  %v835 = vtanh.pop %v833
  %v836 = vmul.f32 %v834, 0.5
  %v837 = vmul.f32 %v835, 0.5
  %v838 = vadd.f32 %v836, 0.5
  %v839 = vadd.f32 %v837, 0.5
  %v840 = vtanh.pop %v818
  %v841 = vtanh.pop %v822
  %v842 = vmul.f32 %v819, 0.5
  %v843 = vmul.f32 %v823, 0.5
  %v844 = vtanh.pop %v842
  %v845 = vtanh.pop %v843
  %v846 = vmul.f32 %v844, 0.5
  %v847 = vmul.f32 %v845, 0.5
  %v848 = vadd.f32 %v846, 0.5
  %v849 = vadd.f32 %v847, 0.5
  %v850 = vmul.f32 %v838, %v699
  %v851 = vmul.f32 %v839, %v700
  %v852 = vmul.f32 %v830, %v840
  %v853 = vmul.f32 %v831, %v841
  %v854 = vadd.f32 %v850, %v852
  %v855 = vadd.f32 %v851, %v853
  %v856 = vtanh.pop %v854
  %v857 = vtanh.pop %v855
  %v858 = vmul.f32 %v848, %v856
  %v859 = vmul.f32 %v849, %v857
  %s860 = scalar_lea.vmem %s5, 32
  %861 = vst [vmem:[%s860] sm:$0xff] %v858
  %862 = vst [vmem:[%s860 + $0x8] sm:$0xff] %v859
  %s863 = scalar_lea.vmem %s0, 96
  %v864 = vld [vmem:[%s863] sm:$0xff]
  %v865 = vld [vmem:[%s863 + $0x8] sm:$0xff]
  %v866 = vld [vmem:[%s863 + $0x10] sm:$0xff]
  %v867 = vld [vmem:[%s863 + $0x18] sm:$0xff]
  %v868 = vunpack.c.l.bf16 %v864
  %v869 = vunpack.c.h.bf16 %v864
  %v870 = vunpack.c.l.bf16 %v865
  %v871 = vunpack.c.h.bf16 %v865
  %v872 = vunpack.c.l.bf16 %v866
  %v873 = vunpack.c.h.bf16 %v866
  %v874 = vunpack.c.l.bf16 %v867
  %v875 = vunpack.c.h.bf16 %v867
  %v876 = vadd.f32 %v868, %v379
  %v877 = vadd.f32 %v869, %v383
  %v878 = vadd.f32 %v870, %v387
  %v879 = vadd.f32 %v871, %v391
  %v880 = vadd.f32 %v872, %v379
  %v881 = vadd.f32 %v873, %v383
  %v882 = vadd.f32 %v874, %v387
  %v883 = vadd.f32 %v875, %v391
  %v884 = vpack.c.bf16 %v859, %v858
  %885 = vmatprep.subr.bf16.mxu0 %v343
  %886 = vmatpush1.bf16.msra.mxu0 %v342
  %887 = vmatprep.subr.bf16.mxu0 %v347
  %888 = vmatpush1.bf16.msra.mxu0 %v346
  %889 = vmatprep.subr.bf16.mxu0 %v351
  %890 = vmatpush1.bf16.msra.mxu0 %v350
  %891 = vmatprep.subr.bf16.mxu0 %v355
  %892 = vmatpush1.bf16.msra.mxu0 %v354
  %893 = vmatprep.subr.bf16.mxu0 %v359
  %894 = vmatpush1.bf16.msra.mxu0 %v358
  %895 = vmatprep.subr.bf16.mxu0 %v363
  %896 = vmatpush1.bf16.msra.mxu0 %v362
  %897 = vmatprep.subr.bf16.mxu0 %v367
  %898 = vmatpush1.bf16.msra.mxu0 %v366
  %899 = vmatprep.subr.bf16.mxu0 %v371
  %900 = vmatpush1.bf16.msra.mxu0 %v370
  %901 = vmatprep.subr.bf16.mxu0 0
  %902 = vmatpush1.bf16.msra.mxu0 0
  %903 = vmatprep.subr.bf16.mxu0 0
  %904 = vmatpush1.bf16.msra.mxu0 0
  %905 = vmatprep.subr.bf16.mxu0 0
  %906 = vmatpush1.bf16.msra.mxu0 0
  %907 = vmatprep.subr.bf16.mxu0 0
  %908 = vmatpush1.bf16.msra.mxu0 0
  %909 = vmatprep.subr.bf16.mxu0 0
  %910 = vmatpush1.bf16.msra.mxu0 0
  %911 = vmatprep.subr.bf16.mxu0 0
  %912 = vmatpush1.bf16.msra.mxu0 0
  %913 = vmatprep.subr.bf16.mxu0 0
  %914 = vmatpush1.bf16.msra.mxu0 0
  %915 = vmatprep.subr.bf16.mxu0 0
  %916 = vmatpush1.bf16.msra.mxu0 0
  %917 = vmatprep.mubr.bf16.mxu0 0
  %918 = vmatmul.mubr.bf16.gmra.mrb[0].mxu0 %v884
  %v919 = vpop.f32.mrb[0].mxu0
  %v920 = vadd.f32 0.0, %v919
  %v921 = vpop.f32.mrb[0].mxu0
  %v922 = vadd.f32 0.0, %v921
  %v923 = vpop.f32.mrb[0].mxu0
  %v924 = vadd.f32 0.0, %v923
  %v925 = vpop.f32.mrb[0].mxu0
  %v926 = vadd.f32 0.0, %v925
  %927 = vdwg.mxu0
  %928 = vmatprep.subr.bf16.mxu0 %v345
  %929 = vmatpush1.bf16.msra.mxu0 %v344
  %930 = vmatprep.subr.bf16.mxu0 %v349
  %931 = vmatpush1.bf16.msra.mxu0 %v348
  %932 = vmatprep.subr.bf16.mxu0 %v353
  %933 = vmatpush1.bf16.msra.mxu0 %v352
  %934 = vmatprep.subr.bf16.mxu0 %v357
  %935 = vmatpush1.bf16.msra.mxu0 %v356
  %936 = vmatprep.subr.bf16.mxu0 %v361
  %937 = vmatpush1.bf16.msra.mxu0 %v360
  %938 = vmatprep.subr.bf16.mxu0 %v365
  %939 = vmatpush1.bf16.msra.mxu0 %v364
  %940 = vmatprep.subr.bf16.mxu0 %v369
  %941 = vmatpush1.bf16.msra.mxu0 %v368
  %942 = vmatprep.subr.bf16.mxu0 %v373
  %943 = vmatpush1.bf16.msra.mxu0 %v372
  %944 = vmatprep.subr.bf16.mxu0 0
  %945 = vmatpush1.bf16.msra.mxu0 0
  %946 = vmatprep.subr.bf16.mxu0 0
  %947 = vmatpush1.bf16.msra.mxu0 0
  %948 = vmatprep.subr.bf16.mxu0 0
  %949 = vmatpush1.bf16.msra.mxu0 0
  %950 = vmatprep.subr.bf16.mxu0 0
  %951 = vmatpush1.bf16.msra.mxu0 0
  %952 = vmatprep.subr.bf16.mxu0 0
  %953 = vmatpush1.bf16.msra.mxu0 0
  %954 = vmatprep.subr.bf16.mxu0 0
  %955 = vmatpush1.bf16.msra.mxu0 0
  %956 = vmatprep.subr.bf16.mxu0 0
  %957 = vmatpush1.bf16.msra.mxu0 0
  %958 = vmatprep.subr.bf16.mxu0 0
  %959 = vmatpush1.bf16.msra.mxu0 0
  %960 = vmatprep.mubr.bf16.mxu0 0
  %961 = vmatmul.mubr.bf16.gmra.mrb[0].mxu0 %v884
  %v962 = vpop.f32.mrb[0].mxu0
  %v963 = vadd.f32 0.0, %v962
  %v964 = vpop.f32.mrb[0].mxu0
  %v965 = vadd.f32 0.0, %v964
  %v966 = vpop.f32.mrb[0].mxu0
  %v967 = vadd.f32 0.0, %v966
  %v968 = vpop.f32.mrb[0].mxu0
  %v969 = vadd.f32 0.0, %v968
  %970 = vdwg.mxu0
  %v971 = vadd.f32 %v876, %v920
  %v972 = vadd.f32 %v877, %v922
  %v973 = vadd.f32 %v878, %v963
  %v974 = vadd.f32 %v879, %v965
  %v975 = vadd.f32 %v880, %v924
  %v976 = vadd.f32 %v881, %v926
  %v977 = vadd.f32 %v882, %v967
  %v978 = vadd.f32 %v883, %v969
  %v979 = vmul.f32 %v971, 0.5
  %v980 = vmul.f32 %v975, 0.5
  %v981 = vtanh.pop %v979
  %v982 = vtanh.pop %v980
  %v983 = vmul.f32 %v981, 0.5
  %v984 = vmul.f32 %v982, 0.5
  %v985 = vadd.f32 %v983, 0.5
  %v986 = vadd.f32 %v984, 0.5
  %v987 = vmul.f32 %v972, 0.5
  %v988 = vmul.f32 %v976, 0.5
  %v989 = vtanh.pop %v987
  %v990 = vtanh.pop %v988
  %v991 = vmul.f32 %v989, 0.5
  %v992 = vmul.f32 %v990, 0.5
  %v993 = vadd.f32 %v991, 0.5
  %v994 = vadd.f32 %v992, 0.5
  %v995 = vtanh.pop %v973
  %v996 = vtanh.pop %v977
  %v997 = vmul.f32 %v974, 0.5
  %v998 = vmul.f32 %v978, 0.5
  %v999 = vtanh.pop %v997
  %v1000 = vtanh.pop %v998
  %v1001 = vmul.f32 %v999, 0.5
  %v1002 = vmul.f32 %v1000, 0.5
  %v1003 = vadd.f32 %v1001, 0.5
  %v1004 = vadd.f32 %v1002, 0.5
  %v1005 = vmul.f32 %v993, %v854
  %v1006 = vmul.f32 %v994, %v855
  %v1007 = vmul.f32 %v985, %v995
  %v1008 = vmul.f32 %v986, %v996
  %v1009 = vadd.f32 %v1005, %v1007
  %v1010 = vadd.f32 %v1006, %v1008
  %v1011 = vtanh.pop %v1009
  %v1012 = vtanh.pop %v1010
  %v1013 = vmul.f32 %v1003, %v1011
  %v1014 = vmul.f32 %v1004, %v1012
  %s1015 = scalar_lea.vmem %s5, 48
  %1016 = vst [vmem:[%s1015] sm:$0xff] %v1013
  %1017 = vst [vmem:[%s1015 + $0x8] sm:$0xff] %v1014
  %s1018 = scalar_lea.vmem %s0, 128
  %v1019 = vld [vmem:[%s1018] sm:$0xff]
  %v1020 = vld [vmem:[%s1018 + $0x8] sm:$0xff]
  %v1021 = vld [vmem:[%s1018 + $0x10] sm:$0xff]
  %v1022 = vld [vmem:[%s1018 + $0x18] sm:$0xff]
  %v1023 = vunpack.c.l.bf16 %v1019
  %v1024 = vunpack.c.h.bf16 %v1019
  %v1025 = vunpack.c.l.bf16 %v1020
  %v1026 = vunpack.c.h.bf16 %v1020
  %v1027 = vunpack.c.l.bf16 %v1021
  %v1028 = vunpack.c.h.bf16 %v1021
  %v1029 = vunpack.c.l.bf16 %v1022
  %v1030 = vunpack.c.h.bf16 %v1022
  %v1031 = vadd.f32 %v1023, %v379
  %v1032 = vadd.f32 %v1024, %v383
  %v1033 = vadd.f32 %v1025, %v387
  %v1034 = vadd.f32 %v1026, %v391
  %v1035 = vadd.f32 %v1027, %v379
  %v1036 = vadd.f32 %v1028, %v383
  %v1037 = vadd.f32 %v1029, %v387
  %v1038 = vadd.f32 %v1030, %v391
  %v1039 = vpack.c.bf16 %v1014, %v1013
  %1040 = vmatprep.subr.bf16.mxu0 %v343
  %1041 = vmatpush1.bf16.msra.mxu0 %v342
  %1042 = vmatprep.subr.bf16.mxu0 %v347
  %1043 = vmatpush1.bf16.msra.mxu0 %v346
  %1044 = vmatprep.subr.bf16.mxu0 %v351
  %1045 = vmatpush1.bf16.msra.mxu0 %v350
  %1046 = vmatprep.subr.bf16.mxu0 %v355
  %1047 = vmatpush1.bf16.msra.mxu0 %v354
  %1048 = vmatprep.subr.bf16.mxu0 %v359
  %1049 = vmatpush1.bf16.msra.mxu0 %v358
  %1050 = vmatprep.subr.bf16.mxu0 %v363
  %1051 = vmatpush1.bf16.msra.mxu0 %v362
  %1052 = vmatprep.subr.bf16.mxu0 %v367
  %1053 = vmatpush1.bf16.msra.mxu0 %v366
  %1054 = vmatprep.subr.bf16.mxu0 %v371
  %1055 = vmatpush1.bf16.msra.mxu0 %v370
  %1056 = vmatprep.subr.bf16.mxu0 0
  %1057 = vmatpush1.bf16.msra.mxu0 0
  %1058 = vmatprep.subr.bf16.mxu0 0
  %1059 = vmatpush1.bf16.msra.mxu0 0
  %1060 = vmatprep.subr.bf16.mxu0 0
  %1061 = vmatpush1.bf16.msra.mxu0 0
  %1062 = vmatprep.subr.bf16.mxu0 0
  %1063 = vmatpush1.bf16.msra.mxu0 0
  %1064 = vmatprep.subr.bf16.mxu0 0
  %1065 = vmatpush1.bf16.msra.mxu0 0
  %1066 = vmatprep.subr.bf16.mxu0 0
  %1067 = vmatpush1.bf16.msra.mxu0 0
  %1068 = vmatprep.subr.bf16.mxu0 0
  %1069 = vmatpush1.bf16.msra.mxu0 0
  %1070 = vmatprep.subr.bf16.mxu0 0
  %1071 = vmatpush1.bf16.msra.mxu0 0
  %1072 = vmatprep.mubr.bf16.mxu0 0
  %1073 = vmatmul.mubr.bf16.gmra.mrb[0].mxu0 %v1039
  %v1074 = vpop.f32.mrb[0].mxu0
  %v1075 = vadd.f32 0.0, %v1074
  %v1076 = vpop.f32.mrb[0].mxu0
  %v1077 = vadd.f32 0.0, %v1076
  %v1078 = vpop.f32.mrb[0].mxu0
  %v1079 = vadd.f32 0.0, %v1078
  %v1080 = vpop.f32.mrb[0].mxu0
  %v1081 = vadd.f32 0.0, %v1080
  %1082 = vdwg.mxu0
  %1083 = vmatprep.subr.bf16.mxu0 %v345
  %1084 = vmatpush1.bf16.msra.mxu0 %v344
  %1085 = vmatprep.subr.bf16.mxu0 %v349
  %1086 = vmatpush1.bf16.msra.mxu0 %v348
  %1087 = vmatprep.subr.bf16.mxu0 %v353
  %1088 = vmatpush1.bf16.msra.mxu0 %v352
  %1089 = vmatprep.subr.bf16.mxu0 %v357
  %1090 = vmatpush1.bf16.msra.mxu0 %v356
  %1091 = vmatprep.subr.bf16.mxu0 %v361
  %1092 = vmatpush1.bf16.msra.mxu0 %v360
  %1093 = vmatprep.subr.bf16.mxu0 %v365
  %1094 = vmatpush1.bf16.msra.mxu0 %v364
  %1095 = vmatprep.subr.bf16.mxu0 %v369
  %1096 = vmatpush1.bf16.msra.mxu0 %v368
  %1097 = vmatprep.subr.bf16.mxu0 %v373
  %1098 = vmatpush1.bf16.msra.mxu0 %v372
  %1099 = vmatprep.subr.bf16.mxu0 0
  %1100 = vmatpush1.bf16.msra.mxu0 0
  %1101 = vmatprep.subr.bf16.mxu0 0
  %1102 = vmatpush1.bf16.msra.mxu0 0
  %1103 = vmatprep.subr.bf16.mxu0 0
  %1104 = vmatpush1.bf16.msra.mxu0 0
  %1105 = vmatprep.subr.bf16.mxu0 0
  %1106 = vmatpush1.bf16.msra.mxu0 0
  %1107 = vmatprep.subr.bf16.mxu0 0
  %1108 = vmatpush1.bf16.msra.mxu0 0
  %1109 = vmatprep.subr.bf16.mxu0 0
  %1110 = vmatpush1.bf16.msra.mxu0 0
  %1111 = vmatprep.subr.bf16.mxu0 0
  %1112 = vmatpush1.bf16.msra.mxu0 0
  %1113 = vmatprep.subr.bf16.mxu0 0
  %1114 = vmatpush1.bf16.msra.mxu0 0
  %1115 = vmatprep.mubr.bf16.mxu0 0
  %1116 = vmatmul.mubr.bf16.gmra.mrb[0].mxu0 %v1039
  %v1117 = vpop.f32.mrb[0].mxu0
  %v1118 = vadd.f32 0.0, %v1117
  %v1119 = vpop.f32.mrb[0].mxu0
  %v1120 = vadd.f32 0.0, %v1119
  %v1121 = vpop.f32.mrb[0].mxu0
  %v1122 = vadd.f32 0.0, %v1121
  %v1123 = vpop.f32.mrb[0].mxu0
  %v1124 = vadd.f32 0.0, %v1123
  %1125 = vdwg.mxu0
  %v1126 = vadd.f32 %v1031, %v1075
  %v1127 = vadd.f32 %v1032, %v1077
  %v1128 = vadd.f32 %v1033, %v1118
  %v1129 = vadd.f32 %v1034, %v1120
  %v1130 = vadd.f32 %v1035, %v1079
  %v1131 = vadd.f32 %v1036, %v1081
  %v1132 = vadd.f32 %v1037, %v1122
  %v1133 = vadd.f32 %v1038, %v1124
  %v1134 = vmul.f32 %v1126, 0.5
  %v1135 = vmul.f32 %v1130, 0.5
  %v1136 = vtanh.pop %v1134
  %v1137 = vtanh.pop %v1135
  %v1138 = vmul.f32 %v1136, 0.5
  %v1139 = vmul.f32 %v1137, 0.5
  %v1140 = vadd.f32 %v1138, 0.5
  %v1141 = vadd.f32 %v1139, 0.5
  %v1142 = vmul.f32 %v1127, 0.5
  %v1143 = vmul.f32 %v1131, 0.5
  %v1144 = vtanh.pop %v1142
  %v1145 = vtanh.pop %v1143
  %v1146 = vmul.f32 %v1144, 0.5
  %v1147 = vmul.f32 %v1145, 0.5
  %v1148 = vadd.f32 %v1146, 0.5
  %v1149 = vadd.f32 %v1147, 0.5
  %v1150 = vtanh.pop %v1128
  %v1151 = vtanh.pop %v1132
  %v1152 = vmul.f32 %v1129, 0.5
  %v1153 = vmul.f32 %v1133, 0.5
  %v1154 = vtanh.pop %v1152
  %v1155 = vtanh.pop %v1153
  %v1156 = vmul.f32 %v1154, 0.5
  %v1157 = vmul.f32 %v1155, 0.5
  %v1158 = vadd.f32 %v1156, 0.5
  %v1159 = vadd.f32 %v1157, 0.5
  %v1160 = vmul.f32 %v1148, %v1009
  %v1161 = vmul.f32 %v1149, %v1010
  %v1162 = vmul.f32 %v1140, %v1150
  %v1163 = vmul.f32 %v1141, %v1151
  %v1164 = vadd.f32 %v1160, %v1162
  %v1165 = vadd.f32 %v1161, %v1163
  %v1166 = vtanh.pop %v1164
  %v1167 = vtanh.pop %v1165
  %v1168 = vmul.f32 %v1158, %v1166
  %v1169 = vmul.f32 %v1159, %v1167
  %s1170 = scalar_lea.vmem %s5, 64
  %1171 = vst [vmem:[%s1170] sm:$0xff] %v1168
  %1172 = vst [vmem:[%s1170 + $0x8] sm:$0xff] %v1169
  %s1173 = scalar_lea.vmem %s0, 160
  %v1174 = vld [vmem:[%s1173] sm:$0xff]
  %v1175 = vld [vmem:[%s1173 + $0x8] sm:$0xff]
  %v1176 = vld [vmem:[%s1173 + $0x10] sm:$0xff]
  %v1177 = vld [vmem:[%s1173 + $0x18] sm:$0xff]
  %v1178 = vunpack.c.l.bf16 %v1174
  %v1179 = vunpack.c.h.bf16 %v1174
  %v1180 = vunpack.c.l.bf16 %v1175
  %v1181 = vunpack.c.h.bf16 %v1175
  %v1182 = vunpack.c.l.bf16 %v1176
  %v1183 = vunpack.c.h.bf16 %v1176
  %v1184 = vunpack.c.l.bf16 %v1177
  %v1185 = vunpack.c.h.bf16 %v1177
  %v1186 = vadd.f32 %v1178, %v379
  %v1187 = vadd.f32 %v1179, %v383
  %v1188 = vadd.f32 %v1180, %v387
  %v1189 = vadd.f32 %v1181, %v391
  %v1190 = vadd.f32 %v1182, %v379
  %v1191 = vadd.f32 %v1183, %v383
  %v1192 = vadd.f32 %v1184, %v387
  %v1193 = vadd.f32 %v1185, %v391
  %v1194 = vpack.c.bf16 %v1169, %v1168
  %1195 = vmatprep.subr.bf16.mxu0 %v343
  %1196 = vmatpush1.bf16.msra.mxu0 %v342
  %1197 = vmatprep.subr.bf16.mxu0 %v347
  %1198 = vmatpush1.bf16.msra.mxu0 %v346
  %1199 = vmatprep.subr.bf16.mxu0 %v351
  %1200 = vmatpush1.bf16.msra.mxu0 %v350
  %1201 = vmatprep.subr.bf16.mxu0 %v355
  %1202 = vmatpush1.bf16.msra.mxu0 %v354
  %1203 = vmatprep.subr.bf16.mxu0 %v359
  %1204 = vmatpush1.bf16.msra.mxu0 %v358
  %1205 = vmatprep.subr.bf16.mxu0 %v363
  %1206 = vmatpush1.bf16.msra.mxu0 %v362
  %1207 = vmatprep.subr.bf16.mxu0 %v367
  %1208 = vmatpush1.bf16.msra.mxu0 %v366
  %1209 = vmatprep.subr.bf16.mxu0 %v371
  %1210 = vmatpush1.bf16.msra.mxu0 %v370
  %1211 = vmatprep.subr.bf16.mxu0 0
  %1212 = vmatpush1.bf16.msra.mxu0 0
  %1213 = vmatprep.subr.bf16.mxu0 0
  %1214 = vmatpush1.bf16.msra.mxu0 0
  %1215 = vmatprep.subr.bf16.mxu0 0
  %1216 = vmatpush1.bf16.msra.mxu0 0
  %1217 = vmatprep.subr.bf16.mxu0 0
  %1218 = vmatpush1.bf16.msra.mxu0 0
  %1219 = vmatprep.subr.bf16.mxu0 0
  %1220 = vmatpush1.bf16.msra.mxu0 0
  %1221 = vmatprep.subr.bf16.mxu0 0
  %1222 = vmatpush1.bf16.msra.mxu0 0
  %1223 = vmatprep.subr.bf16.mxu0 0
  %1224 = vmatpush1.bf16.msra.mxu0 0
  %1225 = vmatprep.subr.bf16.mxu0 0
  %1226 = vmatpush1.bf16.msra.mxu0 0
  %1227 = vmatprep.mubr.bf16.mxu0 0
  %1228 = vmatmul.mubr.bf16.gmra.mrb[0].mxu0 %v1194
  %v1229 = vpop.f32.mrb[0].mxu0
  %v1230 = vadd.f32 0.0, %v1229
  %v1231 = vpop.f32.mrb[0].mxu0
  %v1232 = vadd.f32 0.0, %v1231
  %v1233 = vpop.f32.mrb[0].mxu0
  %v1234 = vadd.f32 0.0, %v1233
  %v1235 = vpop.f32.mrb[0].mxu0
  %v1236 = vadd.f32 0.0, %v1235
  %1237 = vdwg.mxu0
  %1238 = vmatprep.subr.bf16.mxu0 %v345
  %1239 = vmatpush1.bf16.msra.mxu0 %v344
  %1240 = vmatprep.subr.bf16.mxu0 %v349
  %1241 = vmatpush1.bf16.msra.mxu0 %v348
  %1242 = vmatprep.subr.bf16.mxu0 %v353
  %1243 = vmatpush1.bf16.msra.mxu0 %v352
  %1244 = vmatprep.subr.bf16.mxu0 %v357
  %1245 = vmatpush1.bf16.msra.mxu0 %v356
  %1246 = vmatprep.subr.bf16.mxu0 %v361
  %1247 = vmatpush1.bf16.msra.mxu0 %v360
  %1248 = vmatprep.subr.bf16.mxu0 %v365
  %1249 = vmatpush1.bf16.msra.mxu0 %v364
  %1250 = vmatprep.subr.bf16.mxu0 %v369
  %1251 = vmatpush1.bf16.msra.mxu0 %v368
  %1252 = vmatprep.subr.bf16.mxu0 %v373
  %1253 = vmatpush1.bf16.msra.mxu0 %v372
  %1254 = vmatprep.subr.bf16.mxu0 0
  %1255 = vmatpush1.bf16.msra.mxu0 0
  %1256 = vmatprep.subr.bf16.mxu0 0
  %1257 = vmatpush1.bf16.msra.mxu0 0
  %1258 = vmatprep.subr.bf16.mxu0 0
  %1259 = vmatpush1.bf16.msra.mxu0 0
  %1260 = vmatprep.subr.bf16.mxu0 0
  %1261 = vmatpush1.bf16.msra.mxu0 0
  %1262 = vmatprep.subr.bf16.mxu0 0
  %1263 = vmatpush1.bf16.msra.mxu0 0
  %1264 = vmatprep.subr.bf16.mxu0 0
  %1265 = vmatpush1.bf16.msra.mxu0 0
  %1266 = vmatprep.subr.bf16.mxu0 0
  %1267 = vmatpush1.bf16.msra.mxu0 0
  %1268 = vmatprep.subr.bf16.mxu0 0
  %1269 = vmatpush1.bf16.msra.mxu0 0
  %1270 = vmatprep.mubr.bf16.mxu0 0
  %1271 = vmatmul.mubr.bf16.gmra.mrb[0].mxu0 %v1194
  %v1272 = vpop.f32.mrb[0].mxu0
  %v1273 = vadd.f32 0.0, %v1272
  %v1274 = vpop.f32.mrb[0].mxu0
  %v1275 = vadd.f32 0.0, %v1274
  %v1276 = vpop.f32.mrb[0].mxu0
  %v1277 = vadd.f32 0.0, %v1276
  %v1278 = vpop.f32.mrb[0].mxu0
  %v1279 = vadd.f32 0.0, %v1278
  %1280 = vdwg.mxu0
  %v1281 = vadd.f32 %v1186, %v1230
  %v1282 = vadd.f32 %v1187, %v1232
  %v1283 = vadd.f32 %v1188, %v1273
  %v1284 = vadd.f32 %v1189, %v1275
  %v1285 = vadd.f32 %v1190, %v1234
  %v1286 = vadd.f32 %v1191, %v1236
  %v1287 = vadd.f32 %v1192, %v1277
  %v1288 = vadd.f32 %v1193, %v1279
  %v1289 = vmul.f32 %v1281, 0.5
  %v1290 = vmul.f32 %v1285, 0.5
  %v1291 = vtanh.pop %v1289
  %v1292 = vtanh.pop %v1290
  %v1293 = vmul.f32 %v1291, 0.5
  %v1294 = vmul.f32 %v1292, 0.5
  %v1295 = vadd.f32 %v1293, 0.5
  %v1296 = vadd.f32 %v1294, 0.5
  %v1297 = vmul.f32 %v1282, 0.5
  %v1298 = vmul.f32 %v1286, 0.5
  %v1299 = vtanh.pop %v1297
  %v1300 = vtanh.pop %v1298
  %v1301 = vmul.f32 %v1299, 0.5
  %v1302 = vmul.f32 %v1300, 0.5
  %v1303 = vadd.f32 %v1301, 0.5
  %v1304 = vadd.f32 %v1302, 0.5
  %v1305 = vtanh.pop %v1283
  %v1306 = vtanh.pop %v1287
  %v1307 = vmul.f32 %v1284, 0.5
  %v1308 = vmul.f32 %v1288, 0.5
  %v1309 = vtanh.pop %v1307
  %v1310 = vtanh.pop %v1308
  %v1311 = vmul.f32 %v1309, 0.5
  %v1312 = vmul.f32 %v1310, 0.5
  %v1313 = vadd.f32 %v1311, 0.5
  %v1314 = vadd.f32 %v1312, 0.5
  %v1315 = vmul.f32 %v1303, %v1164
  %v1316 = vmul.f32 %v1304, %v1165
  %v1317 = vmul.f32 %v1295, %v1305
  %v1318 = vmul.f32 %v1296, %v1306
  %v1319 = vadd.f32 %v1315, %v1317
  %v1320 = vadd.f32 %v1316, %v1318
  %v1321 = vtanh.pop %v1319
  %v1322 = vtanh.pop %v1320
  %v1323 = vmul.f32 %v1313, %v1321
  %v1324 = vmul.f32 %v1314, %v1322
  %s1325 = scalar_lea.vmem %s5, 80
  %1326 = vst [vmem:[%s1325] sm:$0xff] %v1323
  %1327 = vst [vmem:[%s1325 + $0x8] sm:$0xff] %v1324
  %s1328 = scalar_lea.vmem %s0, 192
  %v1329 = vld [vmem:[%s1328] sm:$0xff]
  %v1330 = vld [vmem:[%s1328 + $0x8] sm:$0xff]
  %v1331 = vld [vmem:[%s1328 + $0x10] sm:$0xff]
  %v1332 = vld [vmem:[%s1328 + $0x18] sm:$0xff]
  %v1333 = vunpack.c.l.bf16 %v1329
  %v1334 = vunpack.c.h.bf16 %v1329
  %v1335 = vunpack.c.l.bf16 %v1330
  %v1336 = vunpack.c.h.bf16 %v1330
  %v1337 = vunpack.c.l.bf16 %v1331
  %v1338 = vunpack.c.h.bf16 %v1331
  %v1339 = vunpack.c.l.bf16 %v1332
  %v1340 = vunpack.c.h.bf16 %v1332
  %v1341 = vadd.f32 %v1333, %v379
  %v1342 = vadd.f32 %v1334, %v383
  %v1343 = vadd.f32 %v1335, %v387
  %v1344 = vadd.f32 %v1336, %v391
  %v1345 = vadd.f32 %v1337, %v379
  %v1346 = vadd.f32 %v1338, %v383
  %v1347 = vadd.f32 %v1339, %v387
  %v1348 = vadd.f32 %v1340, %v391
  %v1349 = vpack.c.bf16 %v1324, %v1323
  %1350 = vmatprep.subr.bf16.mxu0 %v343
  %1351 = vmatpush1.bf16.msra.mxu0 %v342
  %1352 = vmatprep.subr.bf16.mxu0 %v347
  %1353 = vmatpush1.bf16.msra.mxu0 %v346
  %1354 = vmatprep.subr.bf16.mxu0 %v351
  %1355 = vmatpush1.bf16.msra.mxu0 %v350
  %1356 = vmatprep.subr.bf16.mxu0 %v355
  %1357 = vmatpush1.bf16.msra.mxu0 %v354
  %1358 = vmatprep.subr.bf16.mxu0 %v359
  %1359 = vmatpush1.bf16.msra.mxu0 %v358
  %1360 = vmatprep.subr.bf16.mxu0 %v363
  %1361 = vmatpush1.bf16.msra.mxu0 %v362
  %1362 = vmatprep.subr.bf16.mxu0 %v367
  %1363 = vmatpush1.bf16.msra.mxu0 %v366
  %1364 = vmatprep.subr.bf16.mxu0 %v371
  %1365 = vmatpush1.bf16.msra.mxu0 %v370
  %1366 = vmatprep.subr.bf16.mxu0 0
  %1367 = vmatpush1.bf16.msra.mxu0 0
  %1368 = vmatprep.subr.bf16.mxu0 0
  %1369 = vmatpush1.bf16.msra.mxu0 0
  %1370 = vmatprep.subr.bf16.mxu0 0
  %1371 = vmatpush1.bf16.msra.mxu0 0
  %1372 = vmatprep.subr.bf16.mxu0 0
  %1373 = vmatpush1.bf16.msra.mxu0 0
  %1374 = vmatprep.subr.bf16.mxu0 0
  %1375 = vmatpush1.bf16.msra.mxu0 0
  %1376 = vmatprep.subr.bf16.mxu0 0
  %1377 = vmatpush1.bf16.msra.mxu0 0
  %1378 = vmatprep.subr.bf16.mxu0 0
  %1379 = vmatpush1.bf16.msra.mxu0 0
  %1380 = vmatprep.subr.bf16.mxu0 0
  %1381 = vmatpush1.bf16.msra.mxu0 0
  %1382 = vmatprep.mubr.bf16.mxu0 0
  %1383 = vmatmul.mubr.bf16.gmra.mrb[0].mxu0 %v1349
  %v1384 = vpop.f32.mrb[0].mxu0
  %v1385 = vadd.f32 0.0, %v1384
  %v1386 = vpop.f32.mrb[0].mxu0
  %v1387 = vadd.f32 0.0, %v1386
  %v1388 = vpop.f32.mrb[0].mxu0
  %v1389 = vadd.f32 0.0, %v1388
  %v1390 = vpop.f32.mrb[0].mxu0
  %v1391 = vadd.f32 0.0, %v1390
  %1392 = vdwg.mxu0
  %1393 = vmatprep.subr.bf16.mxu0 %v345
  %1394 = vmatpush1.bf16.msra.mxu0 %v344
  %1395 = vmatprep.subr.bf16.mxu0 %v349
  %1396 = vmatpush1.bf16.msra.mxu0 %v348
  %1397 = vmatprep.subr.bf16.mxu0 %v353
  %1398 = vmatpush1.bf16.msra.mxu0 %v352
  %1399 = vmatprep.subr.bf16.mxu0 %v357
  %1400 = vmatpush1.bf16.msra.mxu0 %v356
  %1401 = vmatprep.subr.bf16.mxu0 %v361
  %1402 = vmatpush1.bf16.msra.mxu0 %v360
  %1403 = vmatprep.subr.bf16.mxu0 %v365
  %1404 = vmatpush1.bf16.msra.mxu0 %v364
  %1405 = vmatprep.subr.bf16.mxu0 %v369
  %1406 = vmatpush1.bf16.msra.mxu0 %v368
  %1407 = vmatprep.subr.bf16.mxu0 %v373
  %1408 = vmatpush1.bf16.msra.mxu0 %v372
  %1409 = vmatprep.subr.bf16.mxu0 0
  %1410 = vmatpush1.bf16.msra.mxu0 0
  %1411 = vmatprep.subr.bf16.mxu0 0
  %1412 = vmatpush1.bf16.msra.mxu0 0
  %1413 = vmatprep.subr.bf16.mxu0 0
  %1414 = vmatpush1.bf16.msra.mxu0 0
  %1415 = vmatprep.subr.bf16.mxu0 0
  %1416 = vmatpush1.bf16.msra.mxu0 0
  %1417 = vmatprep.subr.bf16.mxu0 0
  %1418 = vmatpush1.bf16.msra.mxu0 0
  %1419 = vmatprep.subr.bf16.mxu0 0
  %1420 = vmatpush1.bf16.msra.mxu0 0
  %1421 = vmatprep.subr.bf16.mxu0 0
  %1422 = vmatpush1.bf16.msra.mxu0 0
  %1423 = vmatprep.subr.bf16.mxu0 0
  %1424 = vmatpush1.bf16.msra.mxu0 0
  %1425 = vmatprep.mubr.bf16.mxu0 0
  %1426 = vmatmul.mubr.bf16.gmra.mrb[0].mxu0 %v1349
  %v1427 = vpop.f32.mrb[0].mxu0
  %v1428 = vadd.f32 0.0, %v1427
  %v1429 = vpop.f32.mrb[0].mxu0
  %v1430 = vadd.f32 0.0, %v1429
  %v1431 = vpop.f32.mrb[0].mxu0
  %v1432 = vadd.f32 0.0, %v1431
  %v1433 = vpop.f32.mrb[0].mxu0
  %v1434 = vadd.f32 0.0, %v1433
  %1435 = vdwg.mxu0
  %v1436 = vadd.f32 %v1341, %v1385
  %v1437 = vadd.f32 %v1342, %v1387
  %v1438 = vadd.f32 %v1343, %v1428
  %v1439 = vadd.f32 %v1344, %v1430
  %v1440 = vadd.f32 %v1345, %v1389
  %v1441 = vadd.f32 %v1346, %v1391
  %v1442 = vadd.f32 %v1347, %v1432
  %v1443 = vadd.f32 %v1348, %v1434
  %v1444 = vmul.f32 %v1436, 0.5
  %v1445 = vmul.f32 %v1440, 0.5
  %v1446 = vtanh.pop %v1444
  %v1447 = vtanh.pop %v1445
  %v1448 = vmul.f32 %v1446, 0.5
  %v1449 = vmul.f32 %v1447, 0.5
  %v1450 = vadd.f32 %v1448, 0.5
  %v1451 = vadd.f32 %v1449, 0.5
  %v1452 = vmul.f32 %v1437, 0.5
  %v1453 = vmul.f32 %v1441, 0.5
  %v1454 = vtanh.pop %v1452
  %v1455 = vtanh.pop %v1453
  %v1456 = vmul.f32 %v1454, 0.5
  %v1457 = vmul.f32 %v1455, 0.5
  %v1458 = vadd.f32 %v1456, 0.5
  %v1459 = vadd.f32 %v1457, 0.5
  %v1460 = vtanh.pop %v1438
  %v1461 = vtanh.pop %v1442
  %v1462 = vmul.f32 %v1439, 0.5
  %v1463 = vmul.f32 %v1443, 0.5
  %v1464 = vtanh.pop %v1462
  %v1465 = vtanh.pop %v1463
  %v1466 = vmul.f32 %v1464, 0.5
  %v1467 = vmul.f32 %v1465, 0.5
  %v1468 = vadd.f32 %v1466, 0.5
  %v1469 = vadd.f32 %v1467, 0.5
  %v1470 = vmul.f32 %v1458, %v1319
  %v1471 = vmul.f32 %v1459, %v1320
  %v1472 = vmul.f32 %v1450, %v1460
  %v1473 = vmul.f32 %v1451, %v1461
  %v1474 = vadd.f32 %v1470, %v1472
  %v1475 = vadd.f32 %v1471, %v1473
  %v1476 = vtanh.pop %v1474
  %v1477 = vtanh.pop %v1475
  %v1478 = vmul.f32 %v1468, %v1476
  %v1479 = vmul.f32 %v1469, %v1477
  %s1480 = scalar_lea.vmem %s5, 96
  %1481 = vst [vmem:[%s1480] sm:$0xff] %v1478
  %1482 = vst [vmem:[%s1480 + $0x8] sm:$0xff] %v1479
  %s1483 = scalar_lea.vmem %s0, 224
  %v1484 = vld [vmem:[%s1483] sm:$0xff]
  %v1485 = vld [vmem:[%s1483 + $0x8] sm:$0xff]
  %v1486 = vld [vmem:[%s1483 + $0x10] sm:$0xff]
  %v1487 = vld [vmem:[%s1483 + $0x18] sm:$0xff]
  %v1488 = vunpack.c.l.bf16 %v1484
  %v1489 = vunpack.c.h.bf16 %v1484
  %v1490 = vunpack.c.l.bf16 %v1485
  %v1491 = vunpack.c.h.bf16 %v1485
  %v1492 = vunpack.c.l.bf16 %v1486
  %v1493 = vunpack.c.h.bf16 %v1486
  %v1494 = vunpack.c.l.bf16 %v1487
  %v1495 = vunpack.c.h.bf16 %v1487
  %v1496 = vadd.f32 %v1488, %v379
  %v1497 = vadd.f32 %v1489, %v383
  %v1498 = vadd.f32 %v1490, %v387
  %v1499 = vadd.f32 %v1491, %v391
  %v1500 = vadd.f32 %v1492, %v379
  %v1501 = vadd.f32 %v1493, %v383
  %v1502 = vadd.f32 %v1494, %v387
  %v1503 = vadd.f32 %v1495, %v391
  %v1504 = vpack.c.bf16 %v1479, %v1478
  %1505 = vmatprep.subr.bf16.mxu0 %v343
  %1506 = vmatpush1.bf16.msra.mxu0 %v342
  %1507 = vmatprep.subr.bf16.mxu0 %v347
  %1508 = vmatpush1.bf16.msra.mxu0 %v346
  %1509 = vmatprep.subr.bf16.mxu0 %v351
  %1510 = vmatpush1.bf16.msra.mxu0 %v350
  %1511 = vmatprep.subr.bf16.mxu0 %v355
  %1512 = vmatpush1.bf16.msra.mxu0 %v354
  %1513 = vmatprep.subr.bf16.mxu0 %v359
  %1514 = vmatpush1.bf16.msra.mxu0 %v358
  %1515 = vmatprep.subr.bf16.mxu0 %v363
  %1516 = vmatpush1.bf16.msra.mxu0 %v362
  %1517 = vmatprep.subr.bf16.mxu0 %v367
  %1518 = vmatpush1.bf16.msra.mxu0 %v366
  %1519 = vmatprep.subr.bf16.mxu0 %v371
  %1520 = vmatpush1.bf16.msra.mxu0 %v370
  %1521 = vmatprep.subr.bf16.mxu0 0
  %1522 = vmatpush1.bf16.msra.mxu0 0
  %1523 = vmatprep.subr.bf16.mxu0 0
  %1524 = vmatpush1.bf16.msra.mxu0 0
  %1525 = vmatprep.subr.bf16.mxu0 0
  %1526 = vmatpush1.bf16.msra.mxu0 0
  %1527 = vmatprep.subr.bf16.mxu0 0
  %1528 = vmatpush1.bf16.msra.mxu0 0
  %1529 = vmatprep.subr.bf16.mxu0 0
  %1530 = vmatpush1.bf16.msra.mxu0 0
  %1531 = vmatprep.subr.bf16.mxu0 0
  %1532 = vmatpush1.bf16.msra.mxu0 0
  %1533 = vmatprep.subr.bf16.mxu0 0
  %1534 = vmatpush1.bf16.msra.mxu0 0
  %1535 = vmatprep.subr.bf16.mxu0 0
  %1536 = vmatpush1.bf16.msra.mxu0 0
  %1537 = vmatprep.mubr.bf16.mxu0 0
  %1538 = vmatmul.mubr.bf16.gmra.mrb[0].mxu0 %v1504
  %v1539 = vpop.f32.mrb[0].mxu0
  %v1540 = vadd.f32 0.0, %v1539
  %v1541 = vpop.f32.mrb[0].mxu0
  %v1542 = vadd.f32 0.0, %v1541
  %v1543 = vpop.f32.mrb[0].mxu0
  %v1544 = vadd.f32 0.0, %v1543
  %v1545 = vpop.f32.mrb[0].mxu0
  %v1546 = vadd.f32 0.0, %v1545
  %1547 = vdwg.mxu0
  %1548 = vmatprep.subr.bf16.mxu0 %v345
  %1549 = vmatpush1.bf16.msra.mxu0 %v344
  %1550 = vmatprep.subr.bf16.mxu0 %v349
  %1551 = vmatpush1.bf16.msra.mxu0 %v348
  %1552 = vmatprep.subr.bf16.mxu0 %v353
  %1553 = vmatpush1.bf16.msra.mxu0 %v352
  %1554 = vmatprep.subr.bf16.mxu0 %v357
  %1555 = vmatpush1.bf16.msra.mxu0 %v356
  %1556 = vmatprep.subr.bf16.mxu0 %v361
  %1557 = vmatpush1.bf16.msra.mxu0 %v360
  %1558 = vmatprep.subr.bf16.mxu0 %v365
  %1559 = vmatpush1.bf16.msra.mxu0 %v364
  %1560 = vmatprep.subr.bf16.mxu0 %v369
  %1561 = vmatpush1.bf16.msra.mxu0 %v368
  %1562 = vmatprep.subr.bf16.mxu0 %v373
  %1563 = vmatpush1.bf16.msra.mxu0 %v372
  %1564 = vmatprep.subr.bf16.mxu0 0
  %1565 = vmatpush1.bf16.msra.mxu0 0
  %1566 = vmatprep.subr.bf16.mxu0 0
  %1567 = vmatpush1.bf16.msra.mxu0 0
  %1568 = vmatprep.subr.bf16.mxu0 0
  %1569 = vmatpush1.bf16.msra.mxu0 0
  %1570 = vmatprep.subr.bf16.mxu0 0
  %1571 = vmatpush1.bf16.msra.mxu0 0
  %1572 = vmatprep.subr.bf16.mxu0 0
  %1573 = vmatpush1.bf16.msra.mxu0 0
  %1574 = vmatprep.subr.bf16.mxu0 0
  %1575 = vmatpush1.bf16.msra.mxu0 0
  %1576 = vmatprep.subr.bf16.mxu0 0
  %1577 = vmatpush1.bf16.msra.mxu0 0
  %1578 = vmatprep.subr.bf16.mxu0 0
  %1579 = vmatpush1.bf16.msra.mxu0 0
  %1580 = vmatprep.mubr.bf16.mxu0 0
  %1581 = vmatmul.mubr.bf16.gmra.mrb[0].mxu0 %v1504
  %v1582 = vpop.f32.mrb[0].mxu0
  %v1583 = vadd.f32 0.0, %v1582
  %v1584 = vpop.f32.mrb[0].mxu0
  %v1585 = vadd.f32 0.0, %v1584
  %v1586 = vpop.f32.mrb[0].mxu0
  %v1587 = vadd.f32 0.0, %v1586
  %v1588 = vpop.f32.mrb[0].mxu0
  %v1589 = vadd.f32 0.0, %v1588
  %1590 = vdwg.mxu0
  %v1591 = vadd.f32 %v1496, %v1540
  %v1592 = vadd.f32 %v1497, %v1542
  %v1593 = vadd.f32 %v1498, %v1583
  %v1594 = vadd.f32 %v1499, %v1585
  %v1595 = vadd.f32 %v1500, %v1544
  %v1596 = vadd.f32 %v1501, %v1546
  %v1597 = vadd.f32 %v1502, %v1587
  %v1598 = vadd.f32 %v1503, %v1589
  %v1599 = vmul.f32 %v1591, 0.5
  %v1600 = vmul.f32 %v1595, 0.5
  %v1601 = vtanh.pop %v1599
  %v1602 = vtanh.pop %v1600
  %v1603 = vmul.f32 %v1601, 0.5
  %v1604 = vmul.f32 %v1602, 0.5
  %v1605 = vadd.f32 %v1603, 0.5
  %v1606 = vadd.f32 %v1604, 0.5
  %v1607 = vmul.f32 %v1592, 0.5
  %v1608 = vmul.f32 %v1596, 0.5
  %v1609 = vtanh.pop %v1607
  %v1610 = vtanh.pop %v1608
  %v1611 = vmul.f32 %v1609, 0.5
  %v1612 = vmul.f32 %v1610, 0.5
  %v1613 = vadd.f32 %v1611, 0.5
  %v1614 = vadd.f32 %v1612, 0.5
  %v1615 = vtanh.pop %v1593
  %v1616 = vtanh.pop %v1597
  %v1617 = vmul.f32 %v1594, 0.5
  %v1618 = vmul.f32 %v1598, 0.5
  %v1619 = vtanh.pop %v1617
  %v1620 = vtanh.pop %v1618
  %v1621 = vmul.f32 %v1619, 0.5
  %v1622 = vmul.f32 %v1620, 0.5
  %v1623 = vadd.f32 %v1621, 0.5
  %v1624 = vadd.f32 %v1622, 0.5
  %v1625 = vmul.f32 %v1613, %v1474
  %v1626 = vmul.f32 %v1614, %v1475
  %v1627 = vmul.f32 %v1605, %v1615
  %v1628 = vmul.f32 %v1606, %v1616
  %v1629 = vadd.f32 %v1625, %v1627
  %v1630 = vadd.f32 %v1626, %v1628
  %v1631 = vtanh.pop %v1629
  %v1632 = vtanh.pop %v1630
  %v1633 = vmul.f32 %v1623, %v1631
  %v1634 = vmul.f32 %v1624, %v1632
  %s1635 = scalar_lea.vmem %s5, 112
  %1636 = vst [vmem:[%s1635] sm:$0xff] %v1633
  %1637 = vst [vmem:[%s1635 + $0x8] sm:$0xff] %v1634
  %1638 = vst [vmem:[#allocation3] sm:$0xff] %v1633
  %1639 = vst [vmem:[#allocation3 + $0x8] sm:$0xff] %v1634
  %1640 = vst [vmem:[#allocation4] sm:$0xff] %v1629
  %1641 = vst [vmem:[#allocation4 + $0x8] sm:$0xff] %v1630
  // Predicated region
  $region60: #{_lstm_forward_impl.1} parent=0 // pred_check
    %p1642 = pneg %p22
  $region61: #{_lstm_forward_impl.1} parent=0 // pred_check_branch
    %1644 = sbr.rel (%p1642) target = $region63
  $region62: #{_lstm_forward_impl.1} parent=0 // pred_region
    %1645 = vst [vmem:[%s6] sm:$0xff] %v1633
    %1646 = vst [vmem:[%s6 + $0x8] sm:$0xff] %v1634
    %1647 = vst [vmem:[%s7] sm:$0xff] %v1629
    %1648 = vst [vmem:[%s7 + $0x8] sm:$0xff] %v1630
  $region63: #{_lstm_forward_impl.1} parent=0 // pred_fallthru
    _
  // Predicated region
  $region64: #{_lstm_forward_impl.1} parent=0 // pred_check
    _
  $region65: #{_lstm_forward_impl.1} parent=0 // pred_check_branch
    %1650 = sbr.rel (0) target = $region67
  $region66: #{_lstm_forward_impl.1} parent=0 // pred_region
    _
  $region67: #{_lstm_forward_impl.1} parent=0 // pred_fallthru
    _
  // Predicated region
  $region68: #{_lstm_forward_impl.1} parent=0 // pred_check
    _
  $region69: #{_lstm_forward_impl.1} parent=0 // pred_check_branch
    %1652 = sbr.rel (0) target = $region71
  $region70: #{_lstm_forward_impl.1} parent=0 // pred_region
    _
  $region71: #{_lstm_forward_impl.1} parent=0 // pred_fallthru
    _
  // Predicated region
  $region72: #{_lstm_forward_impl.1} parent=0 // pred_check
    _
  $region73: #{_lstm_forward_impl.1} parent=0 // pred_check_branch
    %1654 = sbr.rel (0) target = $region75
  $region74: #{_lstm_forward_impl.1} parent=0 // pred_region
    _
  $region75: #{_lstm_forward_impl.1} parent=0 // pred_fallthru
    _
  // Predicated region
  $region76: #{_lstm_forward_impl.1} parent=0 // pred_check
    _
  $region77: #{_lstm_forward_impl.1} parent=0 // pred_check_branch
    %1656 = sbr.rel (0) target = $region79
  $region78: #{_lstm_forward_impl.1} parent=0 // pred_region
    _
  $region79: #{_lstm_forward_impl.1} parent=0 // pred_fallthru
    _
  // Predicated region
  $region80: #{_lstm_forward_impl.1} parent=0 // pred_check
    _
  $region81: #{_lstm_forward_impl.1} parent=0 // pred_check_branch
    %1658 = sbr.rel (0) target = $region83
  $region82: #{_lstm_forward_impl.1} parent=0 // pred_region
    _
  $region83: #{_lstm_forward_impl.1} parent=0 // pred_fallthru
    _
  // Predicated region
  $region84: #{_lstm_forward_impl.1} parent=0 // pred_check
    _
  $region85: #{_lstm_forward_impl.1} parent=0 // pred_check_branch
    %1660 = sbr.rel (0) target = $region87
  $region86: #{_lstm_forward_impl.1} parent=0 // pred_region
    _
  $region87: #{_lstm_forward_impl.1} parent=0 // pred_fallthru
    _

</llo_original>
